<compile_context>
chip_gen: v5e
topology: v5e:2x2
jax: 0.10.0
libtpu: 0.0.40
codegen_flags: <defaults>
</compile_context>

<pallas_src>
import jax
import jax.numpy as jnp
from jax.experimental import pallas as pl
from jax.experimental.pallas import tpu as pltpu


def _round_up(x, m):
    return (x + m - 1) // m * m


def _cdiv(a, b):
    return (a + b - 1) // b


# ---------------------------------------------------------------------------
# Pallas kernels
# ---------------------------------------------------------------------------
def _conv_relu_pool_kernel(p_ref, w_ref, b_ref, o_ref):
    # p_ref: (4, K, TM) bf16 -- one im2col slab per 2x2 pooling offset
    # w_ref: (OC, K) bf16, b_ref: (OC, 1) f32, o_ref: (OC, TM) bf16
    w = w_ref[...]
    acc = jnp.dot(w, p_ref[0], preferred_element_type=jnp.float32)
    for s in range(1, 4):  # static unroll: elementwise max == 2x2 maxpool
        acc = jnp.maximum(
            acc, jnp.dot(w, p_ref[s], preferred_element_type=jnp.float32)
        )
    # bias is per-channel, so adding after the max is equivalent; relu last
    # (max(relu(.)) == relu(max(.)) since relu is monotone).
    o_ref[...] = jnp.maximum(acc + b_ref[...], 0.0).astype(o_ref.dtype)


def _fc_head_kernel(x_ref, w1_ref, b1_ref, w2_ref, b2_ref, w3_ref, b3_ref, o_ref):
    # Fused fc1+relu -> fc2+relu -> fc3; intermediates stay on-chip.
    # bf16 operands, f32 accumulation, f32 bias/relu.
    h = jnp.dot(x_ref[...], w1_ref[...], preferred_element_type=jnp.float32)
    h = jnp.maximum(h + b1_ref[...], 0.0).astype(jnp.bfloat16)
    h = jnp.dot(h, w2_ref[...], preferred_element_type=jnp.float32)
    h = jnp.maximum(h + b2_ref[...], 0.0).astype(jnp.bfloat16)
    y = jnp.dot(h, w3_ref[...], preferred_element_type=jnp.float32)
    o_ref[...] = (y + b3_ref[...]).astype(o_ref.dtype)


# ---------------------------------------------------------------------------
# Glue: im2col split by pooling offset (layout prep only, plain JAX)
# ---------------------------------------------------------------------------
def _im2col_pooled(x_cbhw, kh, kw):
    """x: (C, B, H, W) channel-major.  Valid conv stride 1 followed by a 2x2/2
    maxpool.  Returns (4, C*kh*kw, B*oh2*ow2): one im2col slab per pooling
    offset (di, dj); K order = (c, i, j) matching PyTorch weight flattening;
    M order = (b, i', j')."""
    C, B, H, W = x_cbhw.shape
    oh, ow = H - kh + 1, W - kw + 1
    oh2, ow2 = oh // 2, ow // 2
    slabs = []
    for di in range(2):
        for dj in range(2):
            cols = []
            for i in range(kh):
                for j in range(kw):
                    r0, c0 = di + i, dj + j
                    sub = x_cbhw[:, :,
                                 r0:r0 + 2 * oh2 - 1:2,
                                 c0:c0 + 2 * ow2 - 1:2]        # (C, B, oh2, ow2)
                    cols.append(sub)
            slab = jnp.stack(cols, axis=1)                      # (C, kh*kw, B, oh2, ow2)
            slabs.append(slab.reshape(C * kh * kw, B * oh2 * ow2))
    return jnp.stack(slabs, axis=0), oh2, ow2                   # (4, K, M)


# ---------------------------------------------------------------------------
# Wrappers around pallas_call
# ---------------------------------------------------------------------------
def conv_relu_pool_pallas(x_cbhw, w, b, tm_max=1024):
    """Fused conv(kernel, valid, stride 1) -> relu -> maxpool(2,2).
    x_cbhw: (C, B, H, W) channel-major; w: (OC, Cw, KH, KW) with Cw <= C
    (any extra input channels of x must be zero).  Returns channel-major
    (round_up(OC, 8), B, H2, W2) in bf16 -- extra output channels are zero."""
    C, B, H, W = x_cbhw.shape
    OC, Cw, KH, KW = w.shape
    assert Cw <= C

    # Tiny zero-pads on the WEIGHTS only (no activation pad / HBM copy):
    #  * in-channels up to C   -> zero rows match the zero input channels
    #  * out-channels up to x8 -> full-sublane output tiles; extra outputs are
    #    relu(0 + 0) == 0 and meet zero weight rows downstream.
    OCp = _round_up(OC, 8)
    w = jnp.pad(w, ((0, OCp - OC), (0, C - Cw), (0, 0), (0, 0)))
    b = jnp.pad(b, ((0, OCp - OC),))

    x_cbhw = x_cbhw.astype(jnp.bfloat16)
    patches, oh2, ow2 = _im2col_pooled(x_cbhw, KH, KW)          # (4, K, M) bf16
    K = C * KH * KW
    M = B * oh2 * ow2

    # Lane-dense M tile: a multiple of 128 (or the full dim when M is tiny),
    # aiming for >= 2 grid steps so both v7x TensorCores get work.  The last
    # tile may be ragged: Pallas clips the input DMA and masks the output
    # store, and M columns are independent, so the valid region is exact.
    if M <= 128:
        tm = M
    else:
        tm = min(tm_max, max(128, _round_up(_cdiv(M, 2), 128)))
    grid_m = _cdiv(M, tm)

    w2 = w.reshape(OCp, K).astype(jnp.bfloat16)                 # (OCp, K)
    b2 = b.reshape(OCp, 1).astype(jnp.float32)

    out = pl.pallas_call(
        _conv_relu_pool_kernel,
        out_shape=jax.ShapeDtypeStruct((OCp, M), jnp.bfloat16),
        grid=(grid_m,),
        in_specs=[
            pl.BlockSpec((4, K, tm), lambda i: (0, 0, i)),      # pipelined over M
            pl.BlockSpec((OCp, K), lambda i: (0, 0)),           # weight: resident
            pl.BlockSpec((OCp, 1), lambda i: (0, 0)),           # bias:   resident
        ],
        out_specs=pl.BlockSpec((OCp, tm), lambda i: (0, i)),
        compiler_params=pltpu.CompilerParams(
            dimension_semantics=("parallel",)),
    )(patches, w2, b2)

    return out.reshape(OCp, B, oh2, ow2)


def fc_head_pallas(x, w1, b1, w2, b2, w3, b3, tb_max=512):
    """Fused relu(x@w1+b1) -> relu(.@w2+b2) -> .@w3+b3.  Weights are (in, out).
    Batch-tiled: weights stay resident, x / out are tiled over B."""
    B, D = x.shape
    H1, H2, NO = w1.shape[1], w2.shape[1], w3.shape[1]

    tb = B if B <= tb_max else tb_max       # full dim, or a multiple of 8
    grid_b = _cdiv(B, tb)                   # ragged last tile is masked

    x = x.astype(jnp.bfloat16)
    w1 = w1.astype(jnp.bfloat16)
    w2 = w2.astype(jnp.bfloat16)
    w3 = w3.astype(jnp.bfloat16)

    return pl.pallas_call(
        _fc_head_kernel,
        out_shape=jax.ShapeDtypeStruct((B, NO), jnp.float32),
        grid=(grid_b,),
        in_specs=[
            pl.BlockSpec((tb, D), lambda i: (i, 0)),            # batch-tiled x
            pl.BlockSpec((D, H1), lambda i: (0, 0)),            # resident weights
            pl.BlockSpec((1, H1), lambda i: (0, 0)),
            pl.BlockSpec((H1, H2), lambda i: (0, 0)),
            pl.BlockSpec((1, H2), lambda i: (0, 0)),
            pl.BlockSpec((H2, NO), lambda i: (0, 0)),
            pl.BlockSpec((1, NO), lambda i: (0, 0)),
        ],
        out_specs=pl.BlockSpec((tb, NO), lambda i: (i, 0)),
        compiler_params=pltpu.CompilerParams(
            dimension_semantics=("parallel",)),
    )(x,
      w1, b1.reshape(1, H1).astype(jnp.float32),
      w2, b2.reshape(1, H2).astype(jnp.float32),
      w3, b3.reshape(1, NO).astype(jnp.float32))


# ---------------------------------------------------------------------------
# Net: conv1(3->6,k5)+relu+pool2 -> conv2(6->16,k5)+relu+pool2
#      -> flatten -> fc1(400->120)+relu -> fc2(120->84)+relu -> fc3(84->10)
# ---------------------------------------------------------------------------
def init_params(key):
    def uinit(k, shape, fan_in):
        bound = 1.0 / float(fan_in) ** 0.5
        return jax.random.uniform(k, shape, jnp.float32, -bound, bound)

    ks = jax.random.split(key, 10)
    return {
        "conv1_w": uinit(ks[0], (6, 3, 5, 5), 3 * 5 * 5),
        "conv1_b": uinit(ks[1], (6,), 3 * 5 * 5),
        "conv2_w": uinit(ks[2], (16, 6, 5, 5), 6 * 5 * 5),
        "conv2_b": uinit(ks[3], (16,), 6 * 5 * 5),
        # FC weights stored pre-transposed as (in, out): no .T at call time.
        "fc1_w": uinit(ks[4], (16 * 5 * 5, 120), 16 * 5 * 5),
        "fc1_b": uinit(ks[5], (120,), 16 * 5 * 5),
        "fc2_w": uinit(ks[6], (120, 84), 120),
        "fc2_b": uinit(ks[7], (84,), 120),
        "fc3_w": uinit(ks[8], (84, 10), 84),
        "fc3_b": uinit(ks[9], (10,), 84),
    }


def net_forward(params, x):
    # x: (B, 3, 32, 32) float32, NCHW (PyTorch convention)
    B = x.shape[0]
    x = jnp.transpose(x, (1, 0, 2, 3))                              # (3, B, 32, 32) channel-major (tiny glue)
    x = conv_relu_pool_pallas(x, params["conv1_w"], params["conv1_b"])  # (8, B, 14, 14) bf16, ch 6..7 == 0
    x = conv_relu_pool_pallas(x, params["conv2_w"], params["conv2_b"])  # (16, B, 5, 5) bf16
    # PyTorch x.view(B, -1) flattens in (C, H, W) order:
    x = jnp.transpose(x, (1, 0, 2, 3)).reshape(B, -1)               # (B, 400) tiny glue
    return fc_head_pallas(
        x,
        params["fc1_w"], params["fc1_b"],
        params["fc2_w"], params["fc2_b"],
        params["fc3_w"], params["fc3_b"],
    )                                                               # (B, 10) f32


if __name__ == "__main__":
    key = jax.random.PRNGKey(0)
    kx, kp = jax.random.split(key)
    # Spatial size 32x32 is required by the module (16*5*5 flatten); batch=2.
    x = jax.random.normal(kx, (2, 3, 32, 32), dtype=jnp.float32)
    params = init_params(kp)

    out = jax.jit(net_forward)(params, x)
    out = jax.block_until_ready(out)
    assert out.shape == (2, 10) and out.dtype == jnp.float32
    assert bool(jnp.all(jnp.isfinite(out)))
    print("KERNEL_OK")
</pallas_src>

<mosaic_0001>
module attributes {stable_mosaic.version = 11 : i64} {
  func.func @_conv_relu_pool_kernel(%arg0: i32, %arg1: memref<4x75x256xbf16, #tpu.memory_space<vmem>>, %arg2: memref<8x75xbf16, #tpu.memory_space<vmem>>, %arg3: memref<8x1xf32, #tpu.memory_space<vmem>>, %arg4: memref<8x256xbf16, #tpu.memory_space<vmem>>) attributes {dimension_semantics = [#tpu.dimension_semantics<parallel>], iteration_bounds = array<i64: 2>, scalar_prefetch = 0 : i64, scratch_operands = 0 : i64, tpu.core_type = #tpu.core_type<tc>, window_params = [{transform_indices = @transform_0, window_bounds = array<i64: 4, 75, 256>}, {pipeline_mode = #tpu.pipeline_mode<synchronous>, transform_indices = @transform_1, window_bounds = array<i64: 8, 75>}, {pipeline_mode = #tpu.pipeline_mode<synchronous>, transform_indices = @transform_2, window_bounds = array<i64: 8, 1>}, {transform_indices = @transform_3, window_bounds = array<i64: 8, 256>}]} {
    %c0 = arith.constant 0 : index
    %c0_0 = arith.constant 0 : index
    %0 = vector.load %arg2[%c0, %c0_0] : memref<8x75xbf16, #tpu.memory_space<vmem>>, vector<8x75xbf16>
    %c0_1 = arith.constant 0 : index
    %c0_2 = arith.constant 0 : index
    %c0_3 = arith.constant 0 : index
    %1 = vector.load %arg1[%c0_1, %c0_2, %c0_3] : memref<4x75x256xbf16, #tpu.memory_space<vmem>>, vector<1x75x256xbf16>
    %2 = vector.shape_cast %1 : vector<1x75x256xbf16> to vector<75x256xbf16>
    %cst = arith.constant dense<0.000000e+00> : vector<8x256xf32>
    %3 = tpu.matmul %0, %2, %cst {dimension_numbers = #tpu.dot_dimension_numbers<[1], [0], [0], [1], [0, 0, 1, 1], [], []>} : vector<8x75xbf16>, vector<75x256xbf16>, vector<8x256xf32> -> vector<8x256xf32>
    %c1 = arith.constant 1 : index
    %c0_4 = arith.constant 0 : index
    %c0_5 = arith.constant 0 : index
    %4 = vector.load %arg1[%c1, %c0_4, %c0_5] : memref<4x75x256xbf16, #tpu.memory_space<vmem>>, vector<1x75x256xbf16>
    %5 = vector.shape_cast %4 : vector<1x75x256xbf16> to vector<75x256xbf16>
    %cst_6 = arith.constant dense<0.000000e+00> : vector<8x256xf32>
    %6 = tpu.matmul %0, %5, %cst_6 {dimension_numbers = #tpu.dot_dimension_numbers<[1], [0], [0], [1], [0, 0, 1, 1], [], []>} : vector<8x75xbf16>, vector<75x256xbf16>, vector<8x256xf32> -> vector<8x256xf32>
    %7 = arith.maximumf %3, %6 : vector<8x256xf32>
    %c2 = arith.constant 2 : index
    %c0_7 = arith.constant 0 : index
    %c0_8 = arith.constant 0 : index
    %8 = vector.load %arg1[%c2, %c0_7, %c0_8] : memref<4x75x256xbf16, #tpu.memory_space<vmem>>, vector<1x75x256xbf16>
    %9 = vector.shape_cast %8 : vector<1x75x256xbf16> to vector<75x256xbf16>
    %cst_9 = arith.constant dense<0.000000e+00> : vector<8x256xf32>
    %10 = tpu.matmul %0, %9, %cst_9 {dimension_numbers = #tpu.dot_dimension_numbers<[1], [0], [0], [1], [0, 0, 1, 1], [], []>} : vector<8x75xbf16>, vector<75x256xbf16>, vector<8x256xf32> -> vector<8x256xf32>
    %11 = arith.maximumf %7, %10 : vector<8x256xf32>
    %c3 = arith.constant 3 : index
    %c0_10 = arith.constant 0 : index
    %c0_11 = arith.constant 0 : index
    %12 = vector.load %arg1[%c3, %c0_10, %c0_11] : memref<4x75x256xbf16, #tpu.memory_space<vmem>>, vector<1x75x256xbf16>
    %13 = vector.shape_cast %12 : vector<1x75x256xbf16> to vector<75x256xbf16>
    %cst_12 = arith.constant dense<0.000000e+00> : vector<8x256xf32>
    %14 = tpu.matmul %0, %13, %cst_12 {dimension_numbers = #tpu.dot_dimension_numbers<[1], [0], [0], [1], [0, 0, 1, 1], [], []>} : vector<8x75xbf16>, vector<75x256xbf16>, vector<8x256xf32> -> vector<8x256xf32>
    %15 = arith.maximumf %11, %14 : vector<8x256xf32>
    %c0_13 = arith.constant 0 : index
    %c0_14 = arith.constant 0 : index
    %16 = vector.load %arg3[%c0_13, %c0_14] : memref<8x1xf32, #tpu.memory_space<vmem>>, vector<8x1xf32>
    %17 = vector.broadcast %16 : vector<8x1xf32> to vector<8x256xf32>
    %18 = arith.addf %15, %17 : vector<8x256xf32>
    %cst_15 = arith.constant 0.000000e+00 : f32
    %19 = vector.broadcast %cst_15 : f32 to vector<8x256xf32>
    %20 = arith.maximumf %18, %19 : vector<8x256xf32>
    %21 = arith.truncf %20 : vector<8x256xf32> to vector<8x256xbf16>
    %c0_16 = arith.constant 0 : index
    %c0_17 = arith.constant 0 : index
    %22 = vector.load %arg4[%c0_16, %c0_17] : memref<8x256xbf16, #tpu.memory_space<vmem>>, vector<8x256xbf16>
    tpu.vector_store %arg4[%c0_16, %c0_17], %21 {strides = array<i32>} : memref<8x256xbf16, #tpu.memory_space<vmem>>, vector<8x256xbf16>,
    return
  }
  func.func @transform_0(%arg0: i32) -> (i32, i32, i32) {
    %c0_i32 = arith.constant 0 : i32
    %c0_i32_0 = arith.constant 0 : i32
    %c0_i32_1 = arith.constant 0 : i32
    return %c0_i32, %c0_i32_0, %arg0 : i32, i32, i32
  }
  func.func @transform_1(%arg0: i32) -> (i32, i32) {
    %c0_i32 = arith.constant 0 : i32
    %c0_i32_0 = arith.constant 0 : i32
    %c0_i32_1 = arith.constant 0 : i32
    return %c0_i32, %c0_i32_0 : i32, i32
  }
  func.func @transform_2(%arg0: i32) -> (i32, i32) {
    %c0_i32 = arith.constant 0 : i32
    %c0_i32_0 = arith.constant 0 : i32
    %c0_i32_1 = arith.constant 0 : i32
    return %c0_i32, %c0_i32_0 : i32, i32
  }
  func.func @transform_3(%arg0: i32) -> (i32, i32) {
    %c0_i32 = arith.constant 0 : i32
    %c0_i32_0 = arith.constant 0 : i32
    return %c0_i32, %arg0 : i32, i32
  }
}

module attributes {stable_mosaic.version = 11 : i64} {
  func.func @_conv_relu_pool_kernel(%arg0: i32, %arg1: memref<4x200x50xbf16, #tpu.memory_space<vmem>>, %arg2: memref<16x200xbf16, #tpu.memory_space<vmem>>, %arg3: memref<16x1xf32, #tpu.memory_space<vmem>>, %arg4: memref<16x50xbf16, #tpu.memory_space<vmem>>) attributes {dimension_semantics = [#tpu.dimension_semantics<parallel>], iteration_bounds = array<i64: 1>, scalar_prefetch = 0 : i64, scratch_operands = 0 : i64, tpu.core_type = #tpu.core_type<tc>, window_params = [{transform_indices = @transform_0, window_bounds = array<i64: 4, 200, 50>}, {pipeline_mode = #tpu.pipeline_mode<synchronous>, transform_indices = @transform_1, window_bounds = array<i64: 16, 200>}, {pipeline_mode = #tpu.pipeline_mode<synchronous>, transform_indices = @transform_2, window_bounds = array<i64: 16, 1>}, {transform_indices = @transform_3, window_bounds = array<i64: 16, 50>}]} {
    %c0 = arith.constant 0 : index
    %c0_0 = arith.constant 0 : index
    %0 = vector.load %arg2[%c0, %c0_0] : memref<16x200xbf16, #tpu.memory_space<vmem>>, vector<16x200xbf16>
    %c0_1 = arith.constant 0 : index
    %c0_2 = arith.constant 0 : index
    %c0_3 = arith.constant 0 : index
    %1 = vector.load %arg1[%c0_1, %c0_2, %c0_3] : memref<4x200x50xbf16, #tpu.memory_space<vmem>>, vector<1x200x50xbf16>
    %2 = vector.shape_cast %1 : vector<1x200x50xbf16> to vector<200x50xbf16>
    %cst = arith.constant dense<0.000000e+00> : vector<16x50xf32>
    %3 = tpu.matmul %0, %2, %cst {dimension_numbers = #tpu.dot_dimension_numbers<[1], [0], [0], [1], [0, 0, 1, 1], [], []>} : vector<16x200xbf16>, vector<200x50xbf16>, vector<16x50xf32> -> vector<16x50xf32>
    %c1 = arith.constant 1 : index
    %c0_4 = arith.constant 0 : index
    %c0_5 = arith.constant 0 : index
    %4 = vector.load %arg1[%c1, %c0_4, %c0_5] : memref<4x200x50xbf16, #tpu.memory_space<vmem>>, vector<1x200x50xbf16>
    %5 = vector.shape_cast %4 : vector<1x200x50xbf16> to vector<200x50xbf16>
    %cst_6 = arith.constant dense<0.000000e+00> : vector<16x50xf32>
    %6 = tpu.matmul %0, %5, %cst_6 {dimension_numbers = #tpu.dot_dimension_numbers<[1], [0], [0], [1], [0, 0, 1, 1], [], []>} : vector<16x200xbf16>, vector<200x50xbf16>, vector<16x50xf32> -> vector<16x50xf32>
    %7 = arith.maximumf %3, %6 : vector<16x50xf32>
    %c2 = arith.constant 2 : index
    %c0_7 = arith.constant 0 : index
    %c0_8 = arith.constant 0 : index
    %8 = vector.load %arg1[%c2, %c0_7, %c0_8] : memref<4x200x50xbf16, #tpu.memory_space<vmem>>, vector<1x200x50xbf16>
    %9 = vector.shape_cast %8 : vector<1x200x50xbf16> to vector<200x50xbf16>
    %cst_9 = arith.constant dense<0.000000e+00> : vector<16x50xf32>
    %10 = tpu.matmul %0, %9, %cst_9 {dimension_numbers = #tpu.dot_dimension_numbers<[1], [0], [0], [1], [0, 0, 1, 1], [], []>} : vector<16x200xbf16>, vector<200x50xbf16>, vector<16x50xf32> -> vector<16x50xf32>
    %11 = arith.maximumf %7, %10 : vector<16x50xf32>
    %c3 = arith.constant 3 : index
    %c0_10 = arith.constant 0 : index
    %c0_11 = arith.constant 0 : index
    %12 = vector.load %arg1[%c3, %c0_10, %c0_11] : memref<4x200x50xbf16, #tpu.memory_space<vmem>>, vector<1x200x50xbf16>
    %13 = vector.shape_cast %12 : vector<1x200x50xbf16> to vector<200x50xbf16>
    %cst_12 = arith.constant dense<0.000000e+00> : vector<16x50xf32>
    %14 = tpu.matmul %0, %13, %cst_12 {dimension_numbers = #tpu.dot_dimension_numbers<[1], [0], [0], [1], [0, 0, 1, 1], [], []>} : vector<16x200xbf16>, vector<200x50xbf16>, vector<16x50xf32> -> vector<16x50xf32>
    %15 = arith.maximumf %11, %14 : vector<16x50xf32>
    %c0_13 = arith.constant 0 : index
    %c0_14 = arith.constant 0 : index
    %16 = vector.load %arg3[%c0_13, %c0_14] : memref<16x1xf32, #tpu.memory_space<vmem>>, vector<16x1xf32>
    %17 = vector.broadcast %16 : vector<16x1xf32> to vector<16x50xf32>
    %18 = arith.addf %15, %17 : vector<16x50xf32>
    %cst_15 = arith.constant 0.000000e+00 : f32
    %19 = vector.broadcast %cst_15 : f32 to vector<16x50xf32>
    %20 = arith.maximumf %18, %19 : vector<16x50xf32>
    %21 = arith.truncf %20 : vector<16x50xf32> to vector<16x50xbf16>
    %c0_16 = arith.constant 0 : index
    %c0_17 = arith.constant 0 : index
    %22 = vector.load %arg4[%c0_16, %c0_17] : memref<16x50xbf16, #tpu.memory_space<vmem>>, vector<16x50xbf16>
    tpu.vector_store %arg4[%c0_16, %c0_17], %21 {strides = array<i32>} : memref<16x50xbf16, #tpu.memory_space<vmem>>, vector<16x50xbf16>,
    return
  }
  func.func @transform_0(%arg0: i32) -> (i32, i32, i32) {
    %c0_i32 = arith.constant 0 : i32
    %c0_i32_0 = arith.constant 0 : i32
    %c0_i32_1 = arith.constant 0 : i32
    return %c0_i32, %c0_i32_0, %arg0 : i32, i32, i32
  }
  func.func @transform_1(%arg0: i32) -> (i32, i32) {
    %c0_i32 = arith.constant 0 : i32
    %c0_i32_0 = arith.constant 0 : i32
    %c0_i32_1 = arith.constant 0 : i32
    return %c0_i32, %c0_i32_0 : i32, i32
  }
  func.func @transform_2(%arg0: i32) -> (i32, i32) {
    %c0_i32 = arith.constant 0 : i32
    %c0_i32_0 = arith.constant 0 : i32
    %c0_i32_1 = arith.constant 0 : i32
    return %c0_i32, %c0_i32_0 : i32, i32
  }
  func.func @transform_3(%arg0: i32) -> (i32, i32) {
    %c0_i32 = arith.constant 0 : i32
    %c0_i32_0 = arith.constant 0 : i32
    return %c0_i32, %arg0 : i32, i32
  }
}

module attributes {stable_mosaic.version = 11 : i64} {
  func.func @_fc_head_kernel(%arg0: i32, %arg1: memref<2x400xbf16, #tpu.memory_space<vmem>>, %arg2: memref<400x120xbf16, #tpu.memory_space<vmem>>, %arg3: memref<1x120xf32, #tpu.memory_space<vmem>>, %arg4: memref<120x84xbf16, #tpu.memory_space<vmem>>, %arg5: memref<1x84xf32, #tpu.memory_space<vmem>>, %arg6: memref<84x10xbf16, #tpu.memory_space<vmem>>, %arg7: memref<1x10xf32, #tpu.memory_space<vmem>>, %arg8: memref<2x10xf32, #tpu.memory_space<vmem>>) attributes {dimension_semantics = [#tpu.dimension_semantics<parallel>], iteration_bounds = array<i64: 1>, scalar_prefetch = 0 : i64, scratch_operands = 0 : i64, tpu.core_type = #tpu.core_type<tc>, window_params = [{transform_indices = @transform_0, window_bounds = array<i64: 2, 400>}, {pipeline_mode = #tpu.pipeline_mode<synchronous>, transform_indices = @transform_1, window_bounds = array<i64: 400, 120>}, {pipeline_mode = #tpu.pipeline_mode<synchronous>, transform_indices = @transform_2, window_bounds = array<i64: 1, 120>}, {pipeline_mode = #tpu.pipeline_mode<synchronous>, transform_indices = @transform_3, window_bounds = array<i64: 120, 84>}, {pipeline_mode = #tpu.pipeline_mode<synchronous>, transform_indices = @transform_4, window_bounds = array<i64: 1, 84>}, {pipeline_mode = #tpu.pipeline_mode<synchronous>, transform_indices = @transform_5, window_bounds = array<i64: 84, 10>}, {pipeline_mode = #tpu.pipeline_mode<synchronous>, transform_indices = @transform_6, window_bounds = array<i64: 1, 10>}, {transform_indices = @transform_7, window_bounds = array<i64: 2, 10>}]} {
    %c0 = arith.constant 0 : index
    %c0_0 = arith.constant 0 : index
    %0 = vector.load %arg1[%c0, %c0_0] : memref<2x400xbf16, #tpu.memory_space<vmem>>, vector<2x400xbf16>
    %c0_1 = arith.constant 0 : index
    %c0_2 = arith.constant 0 : index
    %1 = vector.load %arg2[%c0_1, %c0_2] : memref<400x120xbf16, #tpu.memory_space<vmem>>, vector<400x120xbf16>
    %cst = arith.constant dense<0.000000e+00> : vector<2x120xf32>
    %2 = tpu.matmul %0, %1, %cst {dimension_numbers = #tpu.dot_dimension_numbers<[1], [0], [0], [1], [0, 0, 1, 1], [], []>} : vector<2x400xbf16>, vector<400x120xbf16>, vector<2x120xf32> -> vector<2x120xf32>
    %c0_3 = arith.constant 0 : index
    %c0_4 = arith.constant 0 : index
    %3 = vector.load %arg3[%c0_3, %c0_4] : memref<1x120xf32, #tpu.memory_space<vmem>>, vector<1x120xf32>
    %4 = vector.broadcast %3 : vector<1x120xf32> to vector<2x120xf32>
    %5 = arith.addf %2, %4 : vector<2x120xf32>
    %cst_5 = arith.constant 0.000000e+00 : f32
    %6 = vector.broadcast %cst_5 : f32 to vector<2x120xf32>
    %7 = arith.maximumf %5, %6 : vector<2x120xf32>
    %8 = arith.truncf %7 : vector<2x120xf32> to vector<2x120xbf16>
    %c0_6 = arith.constant 0 : index
    %c0_7 = arith.constant 0 : index
    %9 = vector.load %arg4[%c0_6, %c0_7] : memref<120x84xbf16, #tpu.memory_space<vmem>>, vector<120x84xbf16>
    %cst_8 = arith.constant dense<0.000000e+00> : vector<2x84xf32>
    %10 = tpu.matmul %8, %9, %cst_8 {dimension_numbers = #tpu.dot_dimension_numbers<[1], [0], [0], [1], [0, 0, 1, 1], [], []>} : vector<2x120xbf16>, vector<120x84xbf16>, vector<2x84xf32> -> vector<2x84xf32>
    %c0_9 = arith.constant 0 : index
    %c0_10 = arith.constant 0 : index
    %11 = vector.load %arg5[%c0_9, %c0_10] : memref<1x84xf32, #tpu.memory_space<vmem>>, vector<1x84xf32>
    %12 = vector.broadcast %11 : vector<1x84xf32> to vector<2x84xf32>
    %13 = arith.addf %10, %12 : vector<2x84xf32>
    %cst_11 = arith.constant 0.000000e+00 : f32
    %14 = vector.broadcast %cst_11 : f32 to vector<2x84xf32>
    %15 = arith.maximumf %13, %14 : vector<2x84xf32>
    %16 = arith.truncf %15 : vector<2x84xf32> to vector<2x84xbf16>
    %c0_12 = arith.constant 0 : index
    %c0_13 = arith.constant 0 : index
    %17 = vector.load %arg6[%c0_12, %c0_13] : memref<84x10xbf16, #tpu.memory_space<vmem>>, vector<84x10xbf16>
    %cst_14 = arith.constant dense<0.000000e+00> : vector<2x10xf32>
    %18 = tpu.matmul %16, %17, %cst_14 {dimension_numbers = #tpu.dot_dimension_numbers<[1], [0], [0], [1], [0, 0, 1, 1], [], []>} : vector<2x84xbf16>, vector<84x10xbf16>, vector<2x10xf32> -> vector<2x10xf32>
    %c0_15 = arith.constant 0 : index
    %c0_16 = arith.constant 0 : index
    %19 = vector.load %arg7[%c0_15, %c0_16] : memref<1x10xf32, #tpu.memory_space<vmem>>, vector<1x10xf32>
    %20 = vector.broadcast %19 : vector<1x10xf32> to vector<2x10xf32>
    %21 = arith.addf %18, %20 : vector<2x10xf32>
    %c0_17 = arith.constant 0 : index
    %c0_18 = arith.constant 0 : index
    %22 = vector.load %arg8[%c0_17, %c0_18] : memref<2x10xf32, #tpu.memory_space<vmem>>, vector<2x10xf32>
    tpu.vector_store %arg8[%c0_17, %c0_18], %21 {strides = array<i32>} : memref<2x10xf32, #tpu.memory_space<vmem>>, vector<2x10xf32>,
    return
  }
  func.func @transform_0(%arg0: i32) -> (i32, i32) {
    %c0_i32 = arith.constant 0 : i32
    %c0_i32_0 = arith.constant 0 : i32
    return %arg0, %c0_i32 : i32, i32
  }
  func.func @transform_1(%arg0: i32) -> (i32, i32) {
    %c0_i32 = arith.constant 0 : i32
    %c0_i32_0 = arith.constant 0 : i32
    %c0_i32_1 = arith.constant 0 : i32
    return %c0_i32, %c0_i32_0 : i32, i32
  }
  func.func @transform_2(%arg0: i32) -> (i32, i32) {
    %c0_i32 = arith.constant 0 : i32
    %c0_i32_0 = arith.constant 0 : i32
    %c0_i32_1 = arith.constant 0 : i32
    return %c0_i32, %c0_i32_0 : i32, i32
  }
  func.func @transform_3(%arg0: i32) -> (i32, i32) {
    %c0_i32 = arith.constant 0 : i32
    %c0_i32_0 = arith.constant 0 : i32
    %c0_i32_1 = arith.constant 0 : i32
    return %c0_i32, %c0_i32_0 : i32, i32
  }
  func.func @transform_4(%arg0: i32) -> (i32, i32) {
    %c0_i32 = arith.constant 0 : i32
    %c0_i32_0 = arith.constant 0 : i32
    %c0_i32_1 = arith.constant 0 : i32
    return %c0_i32, %c0_i32_0 : i32, i32
  }
  func.func @transform_5(%arg0: i32) -> (i32, i32) {
    %c0_i32 = arith.constant 0 : i32
    %c0_i32_0 = arith.constant 0 : i32
    %c0_i32_1 = arith.constant 0 : i32
    return %c0_i32, %c0_i32_0 : i32, i32
  }
  func.func @transform_6(%arg0: i32) -> (i32, i32) {
    %c0_i32 = arith.constant 0 : i32
    %c0_i32_0 = arith.constant 0 : i32
    %c0_i32_1 = arith.constant 0 : i32
    return %c0_i32, %c0_i32_0 : i32, i32
  }
  func.func @transform_7(%arg0: i32) -> (i32, i32) {
    %c0_i32 = arith.constant 0 : i32
    %c0_i32_0 = arith.constant 0 : i32
    return %arg0, %c0_i32 : i32, i32
  }
}

</mosaic_0001>

<llo_original>
// kernel: net_forward.3
$region0: #{net_forward.3}
  #allocation0 [shape = 'u32[]', space=smem, size = 0x4, offset = 0x4, fixed_abs, tag = 'smem constant byte address 0x4 - core index']
  #allocation1 [shape = 'u32[72,128]{1,0:T(1,128)}', space=vmem, size = 0x9000, scoped, tag = 'internal scratch']
  %s0 = inlined_call_operand.vmem [shape: bf16[4,75,392], index: 0, kind: input, shape index: {}]
  %s1 = inlined_call_operand.vmem [shape: bf16[8,75], index: 1, kind: input, shape index: {}]
  %s2 = inlined_call_operand.vmem [shape: f32[8,1], index: 2, kind: input, shape index: {}]
  %s3 = inlined_call_operand.vmem [shape: bf16[8,392], index: 3, kind: output, shape index: {}]
  %s4 = sld [smem:[#allocation0]]
  $region83: #{net_forward.3} parent=0
    _
  %s6 = ssub.s32 1, %s4
  %s7 = scalar_select 0, %s6, %s4
  $region1: #{net_forward.3} parent=0
    #allocation2 [shape = 'u8[327680]{0}', space=vmem, size = 0x50000, scoped, tag = 'input window, operand 0']
    loop: start=0, step=1, limit=4
    $region2: #{net_forward.3} parent=1 // loop_pre_header
      _
    $region3: #{net_forward.3} parent=1 // loop_header
      %s9 = sphi 0, %s13
      %p10 = scmp.ge.s32.totalorder %s9, 4
      %s19 = sphi 0, %s21
      %s22 = sphi 0, %s19
      %s23 = sphi 0, %s22
      %s39 = sphi 0, %s23
      %s43 = sphi 0, %s43
      %s45 = sphi 0, %s43
      %s46 = sphi 0, %s45
      %s60 = sphi 0, %s46
      %s64 = sphi 0, %s64
      %s66 = sphi 0, %s64
      %s67 = sphi 0, %s66
      %s81 = sphi 0, %s67
      %s87 = sphi 0, %s89
      %s90 = sphi 0, %s87
      %s91 = sphi 0, %s90
      %s107 = sphi 0, %s91
    $region4: #{net_forward.3} parent=1 // loop_header_branch
      %12 = sbr.rel (%p10) target = $region8
    $region5: #{net_forward.3} parent=1 // loop_body
      %s14 = ssub.s32 %s9, 1
      %s15 = ssub.s32 %s9, 2
      %s16 = sadd.s32 %s9, 1
      %s17 = ssub.s32 %s9, %s16
      %p18 = scmp.eq.s32.totalorder %s17, 0
      %s20 = sadd.s32 %s19, 1
      %s21 = scalar_select %p18, %s19, %s20
      %p24 = pneg %p18
      %p25 = scmp.eq.s32.totalorder %s9, 1
      %p26 = por %p24, %p25
      %p27 = scmp.ne.s32.totalorder %s19, %s22
      %p28 = scmp.eq.s32.totalorder %s9, 0
      %p29 = por %p27, %p28
      %p30 = scmp.ne.s32.totalorder %s19, %s22
      %p31 = scmp.eq.s32.totalorder %s14, 1
      %p32 = por %p30, %p31
      %p33 = scmp.ne.s32.totalorder %s22, %s23
      %p34 = scmp.eq.s32.totalorder %s14, 0
      %p35 = por %p33, %p34
      %p36 = scmp.ne.s32.totalorder %s22, %s23
      %p37 = scmp.eq.s32.totalorder %s15, 1
      %p38 = por %p36, %p37
      %p40 = scmp.ne.s32.totalorder %s23, %s39
      %p41 = scmp.eq.s32.totalorder %s15, 0
      %p42 = por %p40, %p41
      %s44 = sadd.s32 %s43, 1
      %p47 = scmp.eq.s32.totalorder %s9, 1
      %p48 = scmp.ne.s32.totalorder %s43, %s45
      %p49 = scmp.eq.s32.totalorder %s9, 0
      %p50 = por %p48, %p49
      %p51 = scmp.ne.s32.totalorder %s43, %s45
      %p52 = scmp.eq.s32.totalorder %s14, 1
      %p53 = por %p51, %p52
      %p54 = scmp.ne.s32.totalorder %s45, %s46
      %p55 = scmp.eq.s32.totalorder %s14, 0
      %p56 = por %p54, %p55
      %p57 = scmp.ne.s32.totalorder %s45, %s46
      %p58 = scmp.eq.s32.totalorder %s15, 1
      %p59 = por %p57, %p58
      %p61 = scmp.ne.s32.totalorder %s46, %s60
      %p62 = scmp.eq.s32.totalorder %s15, 0
      %p63 = por %p61, %p62
      %s65 = sadd.s32 %s64, 1
      %p68 = scmp.eq.s32.totalorder %s9, 1
      %p69 = scmp.ne.s32.totalorder %s64, %s66
      %p70 = scmp.eq.s32.totalorder %s9, 0
      %p71 = por %p69, %p70
      %p72 = scmp.ne.s32.totalorder %s64, %s66
      %p73 = scmp.eq.s32.totalorder %s14, 1
      %p74 = por %p72, %p73
      %p75 = scmp.ne.s32.totalorder %s66, %s67
      %p76 = scmp.eq.s32.totalorder %s14, 0
      %p77 = por %p75, %p76
      %p78 = scmp.ne.s32.totalorder %s66, %s67
      %p79 = scmp.eq.s32.totalorder %s15, 1
      %p80 = por %p78, %p79
      %p82 = scmp.ne.s32.totalorder %s67, %s81
      %p83 = scmp.eq.s32.totalorder %s15, 0
      %p84 = por %p82, %p83
      %s85 = ssub.s32 %s9, %s16
      %p86 = scmp.eq.s32.totalorder %s85, 0
      %s88 = sadd.s32 %s87, 1
      %s89 = scalar_select %p86, %s87, %s88
      %p92 = pneg %p86
      %p93 = scmp.eq.s32.totalorder %s9, 1
      %p94 = por %p92, %p93
      %p95 = scmp.ne.s32.totalorder %s87, %s90
      %p96 = scmp.eq.s32.totalorder %s9, 0
      %p97 = por %p95, %p96
      %p98 = scmp.ne.s32.totalorder %s87, %s90
      %p99 = scmp.eq.s32.totalorder %s14, 1
      %p100 = por %p98, %p99
      %p101 = scmp.ne.s32.totalorder %s90, %s91
      %p102 = scmp.eq.s32.totalorder %s14, 0
      %p103 = por %p101, %p102
      %p104 = scmp.ne.s32.totalorder %s90, %s91
      %p105 = scmp.eq.s32.totalorder %s15, 1
      %p106 = por %p104, %p105
      %p108 = scmp.ne.s32.totalorder %s91, %s107
      %p109 = scmp.eq.s32.totalorder %s15, 0
      %p110 = por %p108, %p109
      %p111 = scmp.le.s32.totalorder 1, %s9
      %p112 = scmp.lt.s32.totalorder %s9, 3
      %p113 = pnand %p111, %p112
      %p114 = pneg %p113
      // Predicated region
      $region9: #{net_forward.3} parent=5 // pred_check
        _
      $region10: #{net_forward.3} parent=5 // pred_check_branch
        %116 = sbr.rel (%p113) target = $region12
      $region11: #{net_forward.3} parent=5 // pred_region
        %s117 = ssub.s32 %s9, 1
        // Predicated region
        $region13: #{net_forward.3} parent=11 // pred_check
          %p118 = pneg %p56
        $region14: #{net_forward.3} parent=11 // pred_check_branch
          %120 = sbr.rel (%p118) target = $region16
        $region15: #{net_forward.3} parent=11 // pred_region
          _
        $region16: #{net_forward.3} parent=11 // pred_fallthru
          _
        // Predicated region
        $region17: #{net_forward.3} parent=11 // pred_check
          %p121 = pneg %p77
        $region18: #{net_forward.3} parent=11 // pred_check_branch
          %123 = sbr.rel (%p121) target = $region20
        $region19: #{net_forward.3} parent=11 // pred_region
          _
        $region20: #{net_forward.3} parent=11 // pred_fallthru
          _
      $region12: #{net_forward.3} parent=5 // pred_fallthru
        _
      %p124 = scmp.lt.s32.totalorder %s9, 2
      // Predicated region
      $region21: #{net_forward.3} parent=5 // pred_check
        %p125 = pneg %p124
      $region22: #{net_forward.3} parent=5 // pred_check_branch
        %127 = sbr.rel (%p125) target = $region24
      $region23: #{net_forward.3} parent=5 // pred_region
        // Predicated region
        $region25: #{net_forward.3} parent=23 // pred_check
          %p128 = pneg %p29
        $region26: #{net_forward.3} parent=23 // pred_check_branch
          %130 = sbr.rel (%p128) target = $region28
        $region27: #{net_forward.3} parent=23 // pred_region
          %s131 = sand.u32 %s19, 1
          %s132 = sand.u32 %s19, 1
          %s133 = smul.addr %s132, 320
          %s134 = scalar_lea.vmem [#allocation2], %s133
          %s135 = smul.u32 2, %s9
          %s136 = smul.addr %s135, 4
          %s137 = scalar_lea.vmem %s0, %s136
          // Predicated region
          $region29: #{net_forward.3} parent=27 // pred_check
            _
          $region30: #{net_forward.3} parent=27 // pred_check_branch
            %139 = sbr.rel (0) target = $region32
          $region31: #{net_forward.3} parent=27 // pred_region
            // Predicated region
            $region33: #{net_forward.3} parent=31 // pred_check
              _
            $region34: #{net_forward.3} parent=31 // pred_check_branch
              %141 = sbr.rel (0) target = $region36
            $region35: #{net_forward.3} parent=31 // pred_region
              // Predicated region
              $region48: #{net_forward.3} parent=35 // pred_check
                _
              $region49: #{net_forward.3} parent=35 // pred_check_branch
                %235 = sbr.rel (0) target = $region51
              $region50: #{net_forward.3} parent=35 // pred_region
                loop: start=0, step=1, limit=1
                $region52: #{net_forward.3} parent=50 // loop_pre_header
                  _
                $region53: #{net_forward.3} parent=50 // loop_header
                  %s237 = sphi 0, %s241
                  %p238 = scmp.ge.s32.totalorder %s237, 1
                  %s242 = sphi %s137, %s137
                  %s243 = sphi %s134, %s134
                $region54: #{net_forward.3} parent=50 // loop_header_branch
                  %240 = sbr.rel (%p238) target = $region58
                $region55: #{net_forward.3} parent=50 // loop_body
                  %v244 = vld [vmem:[%s242] sm:$0xff]
                  %245 = vst [vmem:[%s243] sm:$0xff] %v244
                  %v246 = vld [vmem:[%s242 + $0x10] sm:$0xff]
                  %247 = vst [vmem:[%s243 + $0x8] sm:$0xff] %v246
                  %v248 = vld [vmem:[%s242 + $0x20] sm:$0xff]
                  %249 = vst [vmem:[%s243 + $0x10] sm:$0xff] %v248
                  %v250 = vld [vmem:[%s242 + $0x30] sm:$0xff]
                  %251 = vst [vmem:[%s243 + $0x18] sm:$0xff] %v250
                  %v252 = vld [vmem:[%s242 + $0x40] sm:$0xff]
                  %253 = vst [vmem:[%s243 + $0x20] sm:$0xff] %v252
                  %v254 = vld [vmem:[%s242 + $0x50] sm:$0xff]
                  %255 = vst [vmem:[%s243 + $0x28] sm:$0xff] %v254
                  %v256 = vld [vmem:[%s242 + $0x60] sm:$0xff]
                  %257 = vst [vmem:[%s243 + $0x30] sm:$0xff] %v256
                  %v258 = vld [vmem:[%s242 + $0x70] sm:$0xff]
                  %259 = vst [vmem:[%s243 + $0x38] sm:$0xff] %v258
                  %v260 = vld [vmem:[%s242 + $0x80] sm:$0xff]
                  %261 = vst [vmem:[%s243 + $0x40] sm:$0xff] %v260
                  %v262 = vld [vmem:[%s242 + $0x90] sm:$0xff]
                  %263 = vst [vmem:[%s243 + $0x48] sm:$0xff] %v262
                  %v264 = vld [vmem:[%s242 + $0xa0] sm:$0xff]
                  %265 = vst [vmem:[%s243 + $0x50] sm:$0xff] %v264
                  %v266 = vld [vmem:[%s242 + $0xb0] sm:$0xff]
                  %267 = vst [vmem:[%s243 + $0x58] sm:$0xff] %v266
                  %v268 = vld [vmem:[%s242 + $0xc0] sm:$0xff]
                  %269 = vst [vmem:[%s243 + $0x60] sm:$0xff] %v268
                  %v270 = vld [vmem:[%s242 + $0xd0] sm:$0xff]
                  %271 = vst [vmem:[%s243 + $0x68] sm:$0xff] %v270
                  %v272 = vld [vmem:[%s242 + $0xe0] sm:$0xff]
                  %273 = vst [vmem:[%s243 + $0x70] sm:$0xff] %v272
                  %v274 = vld [vmem:[%s242 + $0xf0] sm:$0xff]
                  %275 = vst [vmem:[%s243 + $0x78] sm:$0xff] %v274
                  %v276 = vld [vmem:[%s242 + $0x100] sm:$0xff]
                  %277 = vst [vmem:[%s243 + $0x80] sm:$0xff] %v276
                  %v278 = vld [vmem:[%s242 + $0x110] sm:$0xff]
                  %279 = vst [vmem:[%s243 + $0x88] sm:$0xff] %v278
                  %v280 = vld [vmem:[%s242 + $0x120] sm:$0xff]
                  %281 = vst [vmem:[%s243 + $0x90] sm:$0xff] %v280
                  %v282 = vld [vmem:[%s242 + $0x130] sm:$0xff]
                  %283 = vst [vmem:[%s243 + $0x98] sm:$0xff] %v282
                  %v284 = vld [vmem:[%s242 + $0x140] sm:$0xff]
                  %285 = vst [vmem:[%s243 + $0xa0] sm:$0xff] %v284
                  %v286 = vld [vmem:[%s242 + $0x150] sm:$0xff]
                  %287 = vst [vmem:[%s243 + $0xa8] sm:$0xff] %v286
                  %v288 = vld [vmem:[%s242 + $0x160] sm:$0xff]
                  %289 = vst [vmem:[%s243 + $0xb0] sm:$0xff] %v288
                  %v290 = vld [vmem:[%s242 + $0x170] sm:$0xff]
                  %291 = vst [vmem:[%s243 + $0xb8] sm:$0xff] %v290
                  %v292 = vld [vmem:[%s242 + $0x180] sm:$0xff]
                  %293 = vst [vmem:[%s243 + $0xc0] sm:$0xff] %v292
                  %v294 = vld [vmem:[%s242 + $0x190] sm:$0xff]
                  %295 = vst [vmem:[%s243 + $0xc8] sm:$0xff] %v294
                  %v296 = vld [vmem:[%s242 + $0x1a0] sm:$0xff]
                  %297 = vst [vmem:[%s243 + $0xd0] sm:$0xff] %v296
                  %v298 = vld [vmem:[%s242 + $0x1b0] sm:$0xff]
                  %299 = vst [vmem:[%s243 + $0xd8] sm:$0xff] %v298
                  %v300 = vld [vmem:[%s242 + $0x1c0] sm:$0xff]
                  %301 = vst [vmem:[%s243 + $0xe0] sm:$0xff] %v300
                  %v302 = vld [vmem:[%s242 + $0x1d0] sm:$0xff]
                  %303 = vst [vmem:[%s243 + $0xe8] sm:$0xff] %v302
                  %v304 = vld [vmem:[%s242 + $0x1e0] sm:$0xff]
                  %305 = vst [vmem:[%s243 + $0xf0] sm:$0xff] %v304
                  %v306 = vld [vmem:[%s242 + $0x1f0] sm:$0xff]
                  %307 = vst [vmem:[%s243 + $0xf8] sm:$0xff] %v306
                  %v308 = vld [vmem:[%s242 + $0x200] sm:$0xff]
                  %309 = vst [vmem:[%s243 + $0x100] sm:$0xff] %v308
                  %v310 = vld [vmem:[%s242 + $0x210] sm:$0xff]
                  %311 = vst [vmem:[%s243 + $0x108] sm:$0xff] %v310
                  %v312 = vld [vmem:[%s242 + $0x220] sm:$0xff]
                  %313 = vst [vmem:[%s243 + $0x110] sm:$0xff] %v312
                  %v314 = vld [vmem:[%s242 + $0x230] sm:$0xff]
                  %315 = vst [vmem:[%s243 + $0x118] sm:$0xff] %v314
                  %v316 = vld [vmem:[%s242 + $0x240] sm:$0xff]
                  %317 = vst [vmem:[%s243 + $0x120] sm:$0xff] %v316
                  %v318 = vld [vmem:[%s242 + $0x250] sm:$0xff]
                  %319 = vst [vmem:[%s243 + $0x128] sm:$0xff] %v318
                  %v320 = vld [vmem:[%s242 + $0x260] sm:$0xff]
                  %321 = vst [vmem:[%s243 + $0x130] sm:$0xff] %v320
                  %v322 = vld [vmem:[%s242 + $0x270] sm:$0xff]
                  %323 = vst [vmem:[%s243 + $0x138] sm:$0xff] %v322
                $region56: #{net_forward.3} parent=50 // loop_footer
                  %s241 = sadd.s32 1, %s237
                $region57: #{net_forward.3} parent=50 // loop_footer_branch
                  %236 = sbr.rel target = $region53
                $region58: #{net_forward.3} parent=50 // loop_exit
                  _
              $region51: #{net_forward.3} parent=35 // pred_fallthru
                _
              // Predicated region
              $region59: #{net_forward.3} parent=35 // pred_check
                _
              $region60: #{net_forward.3} parent=35 // pred_check_branch
                %325 = sbr.rel target = $region62
              $region61: #{net_forward.3} parent=35 // pred_region
                _
              $region62: #{net_forward.3} parent=35 // pred_fallthru
                _
            $region36: #{net_forward.3} parent=31 // pred_fallthru
              _
            // Predicated region
            $region37: #{net_forward.3} parent=31 // pred_check
              _
            $region38: #{net_forward.3} parent=31 // pred_check_branch
              %143 = sbr.rel target = $region40
            $region39: #{net_forward.3} parent=31 // pred_region
              %s145 = ssub.s32 256, 1
              loop: start=0, step=1, limit=1
              $region41: #{net_forward.3} parent=39 // loop_pre_header
                _
              $region42: #{net_forward.3} parent=39 // loop_header
                %s147 = sphi 0, %s151
                %p148 = scmp.ge.s32.totalorder %s147, 1
                %s152 = sphi %s137, %s137
                %s153 = sphi %s134, %s134
              $region43: #{net_forward.3} parent=39 // loop_header_branch
                %150 = sbr.rel (%p148) target = $region47
              $region44: #{net_forward.3} parent=39 // loop_body
                %v154 = vld [vmem:[%s152] sm:%s145]
                %155 = vst [vmem:[%s153] sm:%s145] %v154
                %v156 = vld [vmem:[%s152 + $0x10] sm:%s145]
                %157 = vst [vmem:[%s153 + $0x8] sm:%s145] %v156
                %v158 = vld [vmem:[%s152 + $0x20] sm:%s145]
                %159 = vst [vmem:[%s153 + $0x10] sm:%s145] %v158
                %v160 = vld [vmem:[%s152 + $0x30] sm:%s145]
                %161 = vst [vmem:[%s153 + $0x18] sm:%s145] %v160
                %v162 = vld [vmem:[%s152 + $0x40] sm:%s145]
                %163 = vst [vmem:[%s153 + $0x20] sm:%s145] %v162
                %v164 = vld [vmem:[%s152 + $0x50] sm:%s145]
                %165 = vst [vmem:[%s153 + $0x28] sm:%s145] %v164
                %v166 = vld [vmem:[%s152 + $0x60] sm:%s145]
                %167 = vst [vmem:[%s153 + $0x30] sm:%s145] %v166
                %v168 = vld [vmem:[%s152 + $0x70] sm:%s145]
                %169 = vst [vmem:[%s153 + $0x38] sm:%s145] %v168
                %v170 = vld [vmem:[%s152 + $0x80] sm:%s145]
                %171 = vst [vmem:[%s153 + $0x40] sm:%s145] %v170
                %v172 = vld [vmem:[%s152 + $0x90] sm:%s145]
                %173 = vst [vmem:[%s153 + $0x48] sm:%s145] %v172
                %v174 = vld [vmem:[%s152 + $0xa0] sm:%s145]
                %175 = vst [vmem:[%s153 + $0x50] sm:%s145] %v174
                %v176 = vld [vmem:[%s152 + $0xb0] sm:%s145]
                %177 = vst [vmem:[%s153 + $0x58] sm:%s145] %v176
                %v178 = vld [vmem:[%s152 + $0xc0] sm:%s145]
                %179 = vst [vmem:[%s153 + $0x60] sm:%s145] %v178
                %v180 = vld [vmem:[%s152 + $0xd0] sm:%s145]
                %181 = vst [vmem:[%s153 + $0x68] sm:%s145] %v180
                %v182 = vld [vmem:[%s152 + $0xe0] sm:%s145]
                %183 = vst [vmem:[%s153 + $0x70] sm:%s145] %v182
                %v184 = vld [vmem:[%s152 + $0xf0] sm:%s145]
                %185 = vst [vmem:[%s153 + $0x78] sm:%s145] %v184
                %v186 = vld [vmem:[%s152 + $0x100] sm:%s145]
                %187 = vst [vmem:[%s153 + $0x80] sm:%s145] %v186
                %v188 = vld [vmem:[%s152 + $0x110] sm:%s145]
                %189 = vst [vmem:[%s153 + $0x88] sm:%s145] %v188
                %v190 = vld [vmem:[%s152 + $0x120] sm:%s145]
                %191 = vst [vmem:[%s153 + $0x90] sm:%s145] %v190
                %v192 = vld [vmem:[%s152 + $0x130] sm:%s145]
                %193 = vst [vmem:[%s153 + $0x98] sm:%s145] %v192
                %v194 = vld [vmem:[%s152 + $0x140] sm:%s145]
                %195 = vst [vmem:[%s153 + $0xa0] sm:%s145] %v194
                %v196 = vld [vmem:[%s152 + $0x150] sm:%s145]
                %197 = vst [vmem:[%s153 + $0xa8] sm:%s145] %v196
                %v198 = vld [vmem:[%s152 + $0x160] sm:%s145]
                %199 = vst [vmem:[%s153 + $0xb0] sm:%s145] %v198
                %v200 = vld [vmem:[%s152 + $0x170] sm:%s145]
                %201 = vst [vmem:[%s153 + $0xb8] sm:%s145] %v200
                %v202 = vld [vmem:[%s152 + $0x180] sm:%s145]
                %203 = vst [vmem:[%s153 + $0xc0] sm:%s145] %v202
                %v204 = vld [vmem:[%s152 + $0x190] sm:%s145]
                %205 = vst [vmem:[%s153 + $0xc8] sm:%s145] %v204
                %v206 = vld [vmem:[%s152 + $0x1a0] sm:%s145]
                %207 = vst [vmem:[%s153 + $0xd0] sm:%s145] %v206
                %v208 = vld [vmem:[%s152 + $0x1b0] sm:%s145]
                %209 = vst [vmem:[%s153 + $0xd8] sm:%s145] %v208
                %v210 = vld [vmem:[%s152 + $0x1c0] sm:%s145]
                %211 = vst [vmem:[%s153 + $0xe0] sm:%s145] %v210
                %v212 = vld [vmem:[%s152 + $0x1d0] sm:%s145]
                %213 = vst [vmem:[%s153 + $0xe8] sm:%s145] %v212
                %v214 = vld [vmem:[%s152 + $0x1e0] sm:%s145]
                %215 = vst [vmem:[%s153 + $0xf0] sm:%s145] %v214
                %v216 = vld [vmem:[%s152 + $0x1f0] sm:%s145]
                %217 = vst [vmem:[%s153 + $0xf8] sm:%s145] %v216
                %v218 = vld [vmem:[%s152 + $0x200] sm:%s145]
                %219 = vst [vmem:[%s153 + $0x100] sm:%s145] %v218
                %v220 = vld [vmem:[%s152 + $0x210] sm:%s145]
                %221 = vst [vmem:[%s153 + $0x108] sm:%s145] %v220
                %v222 = vld [vmem:[%s152 + $0x220] sm:%s145]
                %223 = vst [vmem:[%s153 + $0x110] sm:%s145] %v222
                %v224 = vld [vmem:[%s152 + $0x230] sm:%s145]
                %225 = vst [vmem:[%s153 + $0x118] sm:%s145] %v224
                %v226 = vld [vmem:[%s152 + $0x240] sm:%s145]
                %227 = vst [vmem:[%s153 + $0x120] sm:%s145] %v226
                %v228 = vld [vmem:[%s152 + $0x250] sm:%s145]
                %229 = vst [vmem:[%s153 + $0x128] sm:%s145] %v228
                %v230 = vld [vmem:[%s152 + $0x260] sm:%s145]
                %231 = vst [vmem:[%s153 + $0x130] sm:%s145] %v230
                %v232 = vld [vmem:[%s152 + $0x270] sm:%s145]
                %233 = vst [vmem:[%s153 + $0x138] sm:%s145] %v232
              $region45: #{net_forward.3} parent=39 // loop_footer
                %s151 = sadd.s32 1, %s147
              $region46: #{net_forward.3} parent=39 // loop_footer_branch
                %146 = sbr.rel target = $region42
              $region47: #{net_forward.3} parent=39 // loop_exit
                _
            $region40: #{net_forward.3} parent=31 // pred_fallthru
              _
          $region32: #{net_forward.3} parent=27 // pred_fallthru
            _
          %326 = vnop
        $region28: #{net_forward.3} parent=23 // pred_fallthru
          _
      $region24: #{net_forward.3} parent=5 // pred_fallthru
        _
      %p327 = scmp.le.s32.totalorder 1, %s9
      %p328 = scmp.lt.s32.totalorder %s9, 3
      %p329 = pnand %p327, %p328
      %p330 = pneg %p329
      // Predicated region
      $region63: #{net_forward.3} parent=5 // pred_check
        _
      $region64: #{net_forward.3} parent=5 // pred_check_branch
        %332 = sbr.rel (%p329) target = $region66
      $region65: #{net_forward.3} parent=5 // pred_region
        %s333 = ssub.s32 %s9, 1
        %s334 = sand.u32 %s22, 1
        %s335 = sand.u32 %s22, 1
        %s336 = smul.addr %s335, 320
        %s337 = scalar_lea.vmem [#allocation2], %s336
        // Predicated region
        $region67: #{net_forward.3} parent=65 // pred_check
          %p338 = pneg %p35
        $region68: #{net_forward.3} parent=65 // pred_check_branch
          %340 = sbr.rel (%p338) target = $region70
        $region69: #{net_forward.3} parent=65 // pred_region
          _
        $region70: #{net_forward.3} parent=65 // pred_fallthru
          _
        %s341 = sand.u32 %s22, 1
        %s342 = sand.u32 %s22, 1
        %s343 = smul.addr %s342, 320
        %s344 = scalar_lea.vmem [#allocation2], %s343
        %p345 = pneg %p35
        %p346 = pneg %p32
        %p347 = pneg %p56
        %p348 = pneg %p53
        %p349 = pneg %p77
        %p350 = pneg %p74
        %p351 = pneg %p103
        %p352 = pneg %p100
        %s353 = smul.u32 2, %s14
        %p354 = scmp.lt.s32.totalorder %s353, 3
        %s355 = scalar_select %p354, %s353, 3
        %s356 = smul.addr %s355, 4
        %s357 = scalar_lea.vmem %s3, %s356
        %s358 = smul.u32 2, %s14
        %s359 = smul.u32 2, %s14
        %p360 = scmp.lt.s32.totalorder %s359, 3
        %s361 = scalar_select %p360, %s359, 3
        %s362 = smul.addr %s361, 4
        %s363 = scalar_lea.vmem %s3, %s362
        %s364 = smul.u32 2, %s14
        %v366 = vld [vmem:[%s1] sm:$0xf]
        %v367 = vld [vmem:[%s337] sm:$0xff]
        %v368 = vld [vmem:[%s337 + $0x8] sm:$0xff]
        %v369 = vld [vmem:[%s337 + $0x10] sm:$0xff]
        %v370 = vld [vmem:[%s337 + $0x18] sm:$0xff]
        %v371 = vld [vmem:[%s337 + $0x20] sm:$0xff]
        %v372 = vld [vmem:[%s337 + $0x28] sm:$0xff]
        %v373 = vld [vmem:[%s337 + $0x30] sm:$0xff]
        %v374 = vld [vmem:[%s337 + $0x38] sm:$0xff]
        %v375 = vld [vmem:[%s337 + $0x40] sm:$0xff]
        %v376 = vld [vmem:[%s337 + $0x48] sm:$0x33]
        %v387 = vunpack.c.l.b16 %v367
        %v388 = vunpack.c.h.b16 %v367
        %v389 = vunpack.c.l.b16 %v368
        %v390 = vunpack.c.h.b16 %v368
        %v391 = vunpack.c.l.b16 %v369
        %v392 = vunpack.c.h.b16 %v369
        %v393 = vunpack.c.l.b16 %v370
        %v394 = vunpack.c.h.b16 %v370
        %v395 = vunpack.c.l.b16 %v371
        %v396 = vunpack.c.h.b16 %v371
        %v397 = vunpack.c.l.b16 %v372
        %v398 = vunpack.c.h.b16 %v372
        %v399 = vunpack.c.l.b16 %v373
        %v400 = vunpack.c.h.b16 %v373
        %v401 = vunpack.c.l.b16 %v374
        %v402 = vunpack.c.h.b16 %v374
        %v403 = vunpack.c.l.b16 %v375
        %v404 = vunpack.c.h.b16 %v375
        %v405 = vunpack.c.l.b16 %v376
        %v406 = vunpack.c.h.b16 %v376
        %v407 = vpack.c.b16 %v389, %v387
        %v408 = vpack.c.b16 %v390, %v388
        %v409 = vpack.c.b16 %v393, %v391
        %v410 = vpack.c.b16 %v394, %v392
        %v411 = vpack.c.b16 %v397, %v395
        %v412 = vpack.c.b16 %v398, %v396
        %v413 = vpack.c.b16 %v401, %v399
        %v414 = vpack.c.b16 %v402, %v400
        %v415 = vpack.c.b16 %v405, %v403
        %v416 = vpack.c.b16 %v406, %v404
        %vm425 = vcmask 613376
        %v427 = vsel %vm425, %v366, 0
        %vm429 = vcmask 1044480
        %vm430 = vcmask 1045504
        %v431 = vsel %vm429, 4294967295, 65535
        %v432 = vsel %vm430, %v431, 0
        %v434 = vand.u32 %v415, %v432
        %v437 = vand.u32 %v416, %v432
        %439 = vmatpush.bf16.msra.mxu0 0
        %440 = vmatpush.bf16.msra.mxu0 0
        %441 = vmatpush.bf16.msra.mxu0 0
        %442 = vmatpush.bf16.msra.mxu0 %v434
        %443 = vmatpush.bf16.msra.mxu0 %v413
        %444 = vmatpush.bf16.msra.mxu0 %v411
        %445 = vmatpush.bf16.msra.mxu0 %v409
        %446 = vmatpush.bf16.msra.mxu0 %v407
        %447 = vmatmul.bf16.gmra.mxu0 %v427
        %v448 = vpop.f32.mrf.mxu0
        %v449 = vadd.f32 0.0, %v448
        %v450 = vpop.f32.mrf.mxu0
        %451 = vdwg.mxu0
        %452 = vmatpush.bf16.msra.mxu0 0
        %453 = vmatpush.bf16.msra.mxu0 0
        %454 = vmatpush.bf16.msra.mxu0 0
        %455 = vmatpush.bf16.msra.mxu0 %v437
        %456 = vmatpush.bf16.msra.mxu0 %v414
        %457 = vmatpush.bf16.msra.mxu0 %v412
        %458 = vmatpush.bf16.msra.mxu0 %v410
        %459 = vmatpush.bf16.msra.mxu0 %v408
        %460 = vmatmul.bf16.gmra.mxu0 %v427
        %v461 = vpop.f32.mrf.mxu0
        %v462 = vadd.f32 0.0, %v461
        %v463 = vpop.f32.mrf.mxu0
        %464 = vdwg.mxu0
        %s465 = scalar_lea.vmem %s337, 80 [#allocation2]
        %v466 = vld [vmem:[%s465] sm:$0xff]
        %v467 = vld [vmem:[%s465 + $0x8] sm:$0xff]
        %v468 = vld [vmem:[%s465 + $0x10] sm:$0xff]
        %v469 = vld [vmem:[%s465 + $0x18] sm:$0xff]
        %v470 = vld [vmem:[%s465 + $0x20] sm:$0xff]
        %v471 = vld [vmem:[%s465 + $0x28] sm:$0xff]
        %v472 = vld [vmem:[%s465 + $0x30] sm:$0xff]
        %v473 = vld [vmem:[%s465 + $0x38] sm:$0xff]
        %v474 = vld [vmem:[%s465 + $0x40] sm:$0xff]
        %v475 = vld [vmem:[%s465 + $0x48] sm:$0x33]
        %v486 = vunpack.c.l.b16 %v466
        %v487 = vunpack.c.h.b16 %v466
        %v488 = vunpack.c.l.b16 %v467
        %v489 = vunpack.c.h.b16 %v467
        %v490 = vunpack.c.l.b16 %v468
        %v491 = vunpack.c.h.b16 %v468
        %v492 = vunpack.c.l.b16 %v469
        %v493 = vunpack.c.h.b16 %v469
        %v494 = vunpack.c.l.b16 %v470
        %v495 = vunpack.c.h.b16 %v470
        %v496 = vunpack.c.l.b16 %v471
        %v497 = vunpack.c.h.b16 %v471
        %v498 = vunpack.c.l.b16 %v472
        %v499 = vunpack.c.h.b16 %v472
        %v500 = vunpack.c.l.b16 %v473
        %v501 = vunpack.c.h.b16 %v473
        %v502 = vunpack.c.l.b16 %v474
        %v503 = vunpack.c.h.b16 %v474
        %v504 = vunpack.c.l.b16 %v475
        %v505 = vunpack.c.h.b16 %v475
        %v506 = vpack.c.b16 %v488, %v486
        %v507 = vpack.c.b16 %v489, %v487
        %v508 = vpack.c.b16 %v492, %v490
        %v509 = vpack.c.b16 %v493, %v491
        %v510 = vpack.c.b16 %v496, %v494
        %v511 = vpack.c.b16 %v497, %v495
        %v512 = vpack.c.b16 %v500, %v498
        %v513 = vpack.c.b16 %v501, %v499
        %v514 = vpack.c.b16 %v504, %v502
        %v515 = vpack.c.b16 %v505, %v503
        %v525 = vand.u32 %v514, %v432
        %v528 = vand.u32 %v515, %v432
        %530 = vmatpush.bf16.msra.mxu0 0
        %531 = vmatpush.bf16.msra.mxu0 0
        %532 = vmatpush.bf16.msra.mxu0 0
        %533 = vmatpush.bf16.msra.mxu0 %v525
        %534 = vmatpush.bf16.msra.mxu0 %v512
        %535 = vmatpush.bf16.msra.mxu0 %v510
        %536 = vmatpush.bf16.msra.mxu0 %v508
        %537 = vmatpush.bf16.msra.mxu0 %v506
        %538 = vmatmul.bf16.gmra.mxu0 %v427
        %v539 = vpop.f32.mrf.mxu0
        %v540 = vadd.f32 0.0, %v539
        %v541 = vpop.f32.mrf.mxu0
        %542 = vdwg.mxu0
        %543 = vmatpush.bf16.msra.mxu0 0
        %544 = vmatpush.bf16.msra.mxu0 0
        %545 = vmatpush.bf16.msra.mxu0 0
        %546 = vmatpush.bf16.msra.mxu0 %v528
        %547 = vmatpush.bf16.msra.mxu0 %v513
        %548 = vmatpush.bf16.msra.mxu0 %v511
        %549 = vmatpush.bf16.msra.mxu0 %v509
        %550 = vmatpush.bf16.msra.mxu0 %v507
        %551 = vmatmul.bf16.gmra.mxu0 %v427
        %v552 = vpop.f32.mrf.mxu0
        %v553 = vadd.f32 0.0, %v552
        %v554 = vpop.f32.mrf.mxu0
        %555 = vdwg.mxu0
        %v556 = vmax.f32 %v449, %v540
        %v557 = vmax.f32 %v462, %v553
        %s558 = scalar_lea.vmem %s337, 160 [#allocation2]
        %v559 = vld [vmem:[%s558] sm:$0xff]
        %v560 = vld [vmem:[%s558 + $0x8] sm:$0xff]
        %v561 = vld [vmem:[%s558 + $0x10] sm:$0xff]
        %v562 = vld [vmem:[%s558 + $0x18] sm:$0xff]
        %v563 = vld [vmem:[%s558 + $0x20] sm:$0xff]
        %v564 = vld [vmem:[%s558 + $0x28] sm:$0xff]
        %v565 = vld [vmem:[%s558 + $0x30] sm:$0xff]
        %v566 = vld [vmem:[%s558 + $0x38] sm:$0xff]
        %v567 = vld [vmem:[%s558 + $0x40] sm:$0xff]
        %v568 = vld [vmem:[%s558 + $0x48] sm:$0x33]
        %v579 = vunpack.c.l.b16 %v559
        %v580 = vunpack.c.h.b16 %v559
        %v581 = vunpack.c.l.b16 %v560
        %v582 = vunpack.c.h.b16 %v560
        %v583 = vunpack.c.l.b16 %v561
        %v584 = vunpack.c.h.b16 %v561
        %v585 = vunpack.c.l.b16 %v562
        %v586 = vunpack.c.h.b16 %v562
        %v587 = vunpack.c.l.b16 %v563
        %v588 = vunpack.c.h.b16 %v563
        %v589 = vunpack.c.l.b16 %v564
        %v590 = vunpack.c.h.b16 %v564
        %v591 = vunpack.c.l.b16 %v565
        %v592 = vunpack.c.h.b16 %v565
        %v593 = vunpack.c.l.b16 %v566
        %v594 = vunpack.c.h.b16 %v566
        %v595 = vunpack.c.l.b16 %v567
        %v596 = vunpack.c.h.b16 %v567
        %v597 = vunpack.c.l.b16 %v568
        %v598 = vunpack.c.h.b16 %v568
        %v599 = vpack.c.b16 %v581, %v579
        %v600 = vpack.c.b16 %v582, %v580
        %v601 = vpack.c.b16 %v585, %v583
        %v602 = vpack.c.b16 %v586, %v584
        %v603 = vpack.c.b16 %v589, %v587
        %v604 = vpack.c.b16 %v590, %v588
        %v605 = vpack.c.b16 %v593, %v591
        %v606 = vpack.c.b16 %v594, %v592
        %v607 = vpack.c.b16 %v597, %v595
        %v608 = vpack.c.b16 %v598, %v596
        %v618 = vand.u32 %v607, %v432
        %v621 = vand.u32 %v608, %v432
        %623 = vmatpush.bf16.msra.mxu0 0
        %624 = vmatpush.bf16.msra.mxu0 0
        %625 = vmatpush.bf16.msra.mxu0 0
        %626 = vmatpush.bf16.msra.mxu0 %v618
        %627 = vmatpush.bf16.msra.mxu0 %v605
        %628 = vmatpush.bf16.msra.mxu0 %v603
        %629 = vmatpush.bf16.msra.mxu0 %v601
        %630 = vmatpush.bf16.msra.mxu0 %v599
        %631 = vmatmul.bf16.gmra.mxu0 %v427
        %v632 = vpop.f32.mrf.mxu0
        %v633 = vadd.f32 0.0, %v632
        %v634 = vpop.f32.mrf.mxu0
        %635 = vdwg.mxu0
        %636 = vmatpush.bf16.msra.mxu0 0
        %637 = vmatpush.bf16.msra.mxu0 0
        %638 = vmatpush.bf16.msra.mxu0 0
        %639 = vmatpush.bf16.msra.mxu0 %v621
        %640 = vmatpush.bf16.msra.mxu0 %v606
        %641 = vmatpush.bf16.msra.mxu0 %v604
        %642 = vmatpush.bf16.msra.mxu0 %v602
        %643 = vmatpush.bf16.msra.mxu0 %v600
        %644 = vmatmul.bf16.gmra.mxu0 %v427
        %v645 = vpop.f32.mrf.mxu0
        %v646 = vadd.f32 0.0, %v645
        %v647 = vpop.f32.mrf.mxu0
        %648 = vdwg.mxu0
        %v649 = vmax.f32 %v556, %v633
        %v650 = vmax.f32 %v557, %v646
        %s651 = scalar_lea.vmem %s337, 240 [#allocation2]
        %v652 = vld [vmem:[%s651] sm:$0xff]
        %v653 = vld [vmem:[%s651 + $0x8] sm:$0xff]
        %v654 = vld [vmem:[%s651 + $0x10] sm:$0xff]
        %v655 = vld [vmem:[%s651 + $0x18] sm:$0xff]
        %v656 = vld [vmem:[%s651 + $0x20] sm:$0xff]
        %v657 = vld [vmem:[%s651 + $0x28] sm:$0xff]
        %v658 = vld [vmem:[%s651 + $0x30] sm:$0xff]
        %v659 = vld [vmem:[%s651 + $0x38] sm:$0xff]
        %v660 = vld [vmem:[%s651 + $0x40] sm:$0xff]
        %v661 = vld [vmem:[%s651 + $0x48] sm:$0x33]
        %v672 = vunpack.c.l.b16 %v652
        %v673 = vunpack.c.h.b16 %v652
        %v674 = vunpack.c.l.b16 %v653
        %v675 = vunpack.c.h.b16 %v653
        %v676 = vunpack.c.l.b16 %v654
        %v677 = vunpack.c.h.b16 %v654
        %v678 = vunpack.c.l.b16 %v655
        %v679 = vunpack.c.h.b16 %v655
        %v680 = vunpack.c.l.b16 %v656
        %v681 = vunpack.c.h.b16 %v656
        %v682 = vunpack.c.l.b16 %v657
        %v683 = vunpack.c.h.b16 %v657
        %v684 = vunpack.c.l.b16 %v658
        %v685 = vunpack.c.h.b16 %v658
        %v686 = vunpack.c.l.b16 %v659
        %v687 = vunpack.c.h.b16 %v659
        %v688 = vunpack.c.l.b16 %v660
        %v689 = vunpack.c.h.b16 %v660
        %v690 = vunpack.c.l.b16 %v661
        %v691 = vunpack.c.h.b16 %v661
        %v692 = vpack.c.b16 %v674, %v672
        %v693 = vpack.c.b16 %v675, %v673
        %v694 = vpack.c.b16 %v678, %v676
        %v695 = vpack.c.b16 %v679, %v677
        %v696 = vpack.c.b16 %v682, %v680
        %v697 = vpack.c.b16 %v683, %v681
        %v698 = vpack.c.b16 %v686, %v684
        %v699 = vpack.c.b16 %v687, %v685
        %v700 = vpack.c.b16 %v690, %v688
        %v701 = vpack.c.b16 %v691, %v689
        %v711 = vand.u32 %v700, %v432
        %v714 = vand.u32 %v701, %v432
        %716 = vmatpush.bf16.msra.mxu0 0
        %717 = vmatpush.bf16.msra.mxu0 0
        %718 = vmatpush.bf16.msra.mxu0 0
        %719 = vmatpush.bf16.msra.mxu0 %v711
        %720 = vmatpush.bf16.msra.mxu0 %v698
        %721 = vmatpush.bf16.msra.mxu0 %v696
        %722 = vmatpush.bf16.msra.mxu0 %v694
        %723 = vmatpush.bf16.msra.mxu0 %v692
        %724 = vmatmul.bf16.gmra.mxu0 %v427
        %v725 = vpop.f32.mrf.mxu0
        %v726 = vadd.f32 0.0, %v725
        %v727 = vpop.f32.mrf.mxu0
        %728 = vdwg.mxu0
        %729 = vmatpush.bf16.msra.mxu0 0
        %730 = vmatpush.bf16.msra.mxu0 0
        %731 = vmatpush.bf16.msra.mxu0 0
        %732 = vmatpush.bf16.msra.mxu0 %v714
        %733 = vmatpush.bf16.msra.mxu0 %v699
        %734 = vmatpush.bf16.msra.mxu0 %v697
        %735 = vmatpush.bf16.msra.mxu0 %v695
        %736 = vmatpush.bf16.msra.mxu0 %v693
        %737 = vmatmul.bf16.gmra.mxu0 %v427
        %v738 = vpop.f32.mrf.mxu0
        %v739 = vadd.f32 0.0, %v738
        %v740 = vpop.f32.mrf.mxu0
        %741 = vdwg.mxu0
        %v742 = vmax.f32 %v649, %v726
        %v743 = vmax.f32 %v650, %v739
        %v744 = vld [vmem:[%s2] sm:$0xff]
        %746 = vset.pattern.permute.xlu0 0
        %747 = vperm.xlu0 %746, %v744
        %v748 = vpop.permute.xlu0 %747
        %v750 = vadd.f32 %v742, %v748
        %v751 = vadd.f32 %v743, %v748
        %v752 = vmax.f32 %v750, 0.0
        %v753 = vmax.f32 %v751, 0.0
        %v754 = vpack.c.bf16 %v753, %v752
        %755 = vst [vmem:[%s363] sm:$0xff] %v754
        %s756 = smul.u32 2, %s14
        %p757 = scmp.lt.s32.totalorder %s756, 3
        %s758 = scalar_select %p757, %s756, 3
        %s759 = smul.addr %s758, 4
        %s760 = scalar_lea.vmem %s3, %s759
        // Predicated region
        $region71: #{net_forward.3} parent=65 // pred_check
          %p761 = pneg %p100
        $region72: #{net_forward.3} parent=65 // pred_check_branch
          %763 = sbr.rel (%p761) target = $region74
        $region73: #{net_forward.3} parent=65 // pred_region
          %s764 = smul.u32 2, %s14
        $region74: #{net_forward.3} parent=65 // pred_fallthru
          _
      $region66: #{net_forward.3} parent=5 // pred_fallthru
        _
      %p765 = scmp.le.s32.totalorder 2, %s9
      // Predicated region
      $region75: #{net_forward.3} parent=5 // pred_check
        %p766 = pneg %p765
      $region76: #{net_forward.3} parent=5 // pred_check_branch
        %768 = sbr.rel (%p766) target = $region78
      $region77: #{net_forward.3} parent=5 // pred_region
        %s769 = ssub.s32 %s9, 2
        // Predicated region
        $region79: #{net_forward.3} parent=77 // pred_check
          %p770 = pneg %p106
        $region80: #{net_forward.3} parent=77 // pred_check_branch
          %772 = sbr.rel (%p770) target = $region82
        $region81: #{net_forward.3} parent=77 // pred_region
          %s773 = smul.u32 2, %s15
          %p774 = scmp.lt.s32.totalorder %s773, 3
          %s775 = scalar_select %p774, %s773, 3
          %s776 = smul.addr %s775, 4
          %s777 = scalar_lea.vmem %s3, %s776
        $region82: #{net_forward.3} parent=77 // pred_fallthru
          _
      $region78: #{net_forward.3} parent=5 // pred_fallthru
        _
    $region6: #{net_forward.3} parent=1 // loop_footer
      %s13 = sadd.s32 1, %s9
    $region7: #{net_forward.3} parent=1 // loop_footer_branch
      %8 = sbr.rel target = $region3
    $region8: #{net_forward.3} parent=1 // loop_exit
      _

// kernel: net_forward.4
$region0: #{net_forward.4}
  #allocation0 [shape = 'u32[]', space=smem, size = 0x4, offset = 0x4, fixed_abs, tag = 'smem constant byte address 0x4 - core index']
  #allocation1 [shape = 'u32[72,128]{1,0:T(1,128)}', space=vmem, size = 0x9000, scoped, tag = 'internal scratch']
  %s0 = inlined_call_operand.vmem [shape: bf16[4,200,50], index: 0, kind: input, shape index: {}]
  %s1 = inlined_call_operand.vmem [shape: bf16[16,200], index: 1, kind: input, shape index: {}]
  %s2 = inlined_call_operand.vmem [shape: f32[16,1], index: 2, kind: input, shape index: {}]
  %s3 = inlined_call_operand.vmem [shape: bf16[16,50], index: 3, kind: output, shape index: {}]
  %s4 = sld [smem:[#allocation0]]
  $region22: #{net_forward.4} parent=0
    _
  %s6 = ssub.s32 1, %s4
  %s7 = scalar_select 0, %s6, %s4
  // Predicated region
  $region2: #{net_forward.4} parent=0 // pred_check
    _
  $region3: #{net_forward.4} parent=0 // pred_check_branch
    %9 = sbr.rel (0) target = $region5
  $region4: #{net_forward.4} parent=0 // pred_region
    _
  $region5: #{net_forward.4} parent=0 // pred_fallthru
    _
  // Predicated region
  $region6: #{net_forward.4} parent=0 // pred_check
    _
  $region7: #{net_forward.4} parent=0 // pred_check_branch
    %11 = sbr.rel (0) target = $region9
  $region8: #{net_forward.4} parent=0 // pred_region
    _
  $region9: #{net_forward.4} parent=0 // pred_fallthru
    _
  // Predicated region
  $region10: #{net_forward.4} parent=0 // pred_check
    _
  $region11: #{net_forward.4} parent=0 // pred_check_branch
    %13 = sbr.rel (0) target = $region13
  $region12: #{net_forward.4} parent=0 // pred_region
    _
  $region13: #{net_forward.4} parent=0 // pred_fallthru
    _
  %v15 = vld [vmem:[%s1] sm:$0xff]
  %v16 = vld [vmem:[%s1 + $0x8] sm:$0xff]
  %v17 = vld [vmem:[%s0] sm:$0xf]
  %v18 = vld [vmem:[%s0 + $0x4] sm:$0xf]
  %v19 = vld [vmem:[%s0 + $0x8] sm:$0xf]
  %v20 = vld [vmem:[%s0 + $0xc] sm:$0xf]
  %v21 = vld [vmem:[%s0 + $0x10] sm:$0xf]
  %v22 = vld [vmem:[%s0 + $0x14] sm:$0xf]
  %v23 = vld [vmem:[%s0 + $0x18] sm:$0xf]
  %v24 = vld [vmem:[%s0 + $0x1c] sm:$0xf]
  %v25 = vld [vmem:[%s0 + $0x20] sm:$0xf]
  %v26 = vld [vmem:[%s0 + $0x24] sm:$0xf]
  %v27 = vld [vmem:[%s0 + $0x28] sm:$0xf]
  %v28 = vld [vmem:[%s0 + $0x2c] sm:$0xf]
  %v29 = vld [vmem:[%s0 + $0x30] sm:$0xf]
  %v30 = vld [vmem:[%s0 + $0x34] sm:$0xf]
  %v31 = vld [vmem:[%s0 + $0x38] sm:$0xf]
  %v32 = vld [vmem:[%s0 + $0x3c] sm:$0xf]
  %v33 = vld [vmem:[%s0 + $0x40] sm:$0xf]
  %v34 = vld [vmem:[%s0 + $0x44] sm:$0xf]
  %v35 = vld [vmem:[%s0 + $0x48] sm:$0xf]
  %v36 = vld [vmem:[%s0 + $0x4c] sm:$0xf]
  %v37 = vld [vmem:[%s0 + $0x50] sm:$0xf]
  %v38 = vld [vmem:[%s0 + $0x54] sm:$0xf]
  %v39 = vld [vmem:[%s0 + $0x58] sm:$0xf]
  %v40 = vld [vmem:[%s0 + $0x5c] sm:$0xf]
  %v41 = vld [vmem:[%s0 + $0x60] sm:$0xf]
  %v44 = vunpack.c.l.b16 %v15
  %v45 = vunpack.c.h.b16 %v15
  %v46 = vunpack.c.l.b16 %v16
  %v47 = vunpack.c.h.b16 %v16
  %v48 = vpack.c.b16 %v46, %v44
  %v49 = vpack.c.b16 %v47, %v45
  %v76 = vunpack.c.l.b16 %v17
  %v77 = vunpack.c.l.b16 %v18
  %v78 = vunpack.c.l.b16 %v19
  %v79 = vunpack.c.l.b16 %v20
  %v80 = vunpack.c.l.b16 %v21
  %v81 = vunpack.c.l.b16 %v22
  %v82 = vunpack.c.l.b16 %v23
  %v83 = vunpack.c.l.b16 %v24
  %v84 = vunpack.c.l.b16 %v25
  %v85 = vunpack.c.l.b16 %v26
  %v86 = vunpack.c.l.b16 %v27
  %v87 = vunpack.c.l.b16 %v28
  %v88 = vunpack.c.l.b16 %v29
  %v89 = vunpack.c.l.b16 %v30
  %v90 = vunpack.c.l.b16 %v31
  %v91 = vunpack.c.l.b16 %v32
  %v92 = vunpack.c.l.b16 %v33
  %v93 = vunpack.c.l.b16 %v34
  %v94 = vunpack.c.l.b16 %v35
  %v95 = vunpack.c.l.b16 %v36
  %v96 = vunpack.c.l.b16 %v37
  %v97 = vunpack.c.l.b16 %v38
  %v98 = vunpack.c.l.b16 %v39
  %v99 = vunpack.c.l.b16 %v40
  %v100 = vunpack.c.l.b16 %v41
  %v101 = vpack.c.b16 %v77, %v76
  %v102 = vpack.c.b16 %v79, %v78
  %v103 = vpack.c.b16 %v81, %v80
  %v104 = vpack.c.b16 %v83, %v82
  %v105 = vpack.c.b16 %v85, %v84
  %v106 = vpack.c.b16 %v87, %v86
  %v107 = vpack.c.b16 %v89, %v88
  %v108 = vpack.c.b16 %v91, %v90
  %v109 = vpack.c.b16 %v93, %v92
  %v110 = vpack.c.b16 %v95, %v94
  %v111 = vpack.c.b16 %v97, %v96
  %v112 = vpack.c.b16 %v99, %v98
  %v113 = vpack.c.b16 %v100, %v100
  %vm126 = vcmask 588800
  %v128 = vsel %vm126, %v49, 0
  %vm130 = vcmask 1043456
  %v132 = vsel %vm130, %v113, 0
  %134 = vmatpush.bf16.msra.mxu0 %v108
  %135 = vmatpush.bf16.msra.mxu0 %v107
  %136 = vmatpush.bf16.msra.mxu0 %v106
  %137 = vmatpush.bf16.msra.mxu0 %v105
  %138 = vmatpush.bf16.msra.mxu0 %v104
  %139 = vmatpush.bf16.msra.mxu0 %v103
  %140 = vmatpush.bf16.msra.mxu0 %v102
  %141 = vmatpush.bf16.msra.mxu0 %v101
  %142 = vmatmul.bf16.gmra.mxu0 %v48
  %v143 = vpop.f32.mrf.mxu0
  %v144 = vadd.f32 0.0, %v143
  %v145 = vpop.f32.mrf.mxu0
  %v146 = vadd.f32 0.0, %v145
  %147 = vdwg.mxu0
  %148 = vmatpush.bf16.msra.mxu0 0
  %149 = vmatpush.bf16.msra.mxu0 0
  %150 = vmatpush.bf16.msra.mxu0 0
  %151 = vmatpush.bf16.msra.mxu0 %v132
  %152 = vmatpush.bf16.msra.mxu0 %v112
  %153 = vmatpush.bf16.msra.mxu0 %v111
  %154 = vmatpush.bf16.msra.mxu0 %v110
  %155 = vmatpush.bf16.msra.mxu0 %v109
  %156 = vmatmul.bf16.gmra.mxu0 %v128
  %v157 = vpop.f32.mrf.mxu0
  %v158 = vadd.f32 %v144, %v157
  %v159 = vpop.f32.mrf.mxu0
  %v160 = vadd.f32 %v146, %v159
  %161 = vdwg.mxu0
  %s162 = scalar_lea.vmem %s0, 100
  %v163 = vld [vmem:[%s162] sm:$0xf]
  %v164 = vld [vmem:[%s162 + $0x4] sm:$0xf]
  %v165 = vld [vmem:[%s162 + $0x8] sm:$0xf]
  %v166 = vld [vmem:[%s162 + $0xc] sm:$0xf]
  %v167 = vld [vmem:[%s162 + $0x10] sm:$0xf]
  %v168 = vld [vmem:[%s162 + $0x14] sm:$0xf]
  %v169 = vld [vmem:[%s162 + $0x18] sm:$0xf]
  %v170 = vld [vmem:[%s162 + $0x1c] sm:$0xf]
  %v171 = vld [vmem:[%s162 + $0x20] sm:$0xf]
  %v172 = vld [vmem:[%s162 + $0x24] sm:$0xf]
  %v173 = vld [vmem:[%s162 + $0x28] sm:$0xf]
  %v174 = vld [vmem:[%s162 + $0x2c] sm:$0xf]
  %v175 = vld [vmem:[%s162 + $0x30] sm:$0xf]
  %v176 = vld [vmem:[%s162 + $0x34] sm:$0xf]
  %v177 = vld [vmem:[%s162 + $0x38] sm:$0xf]
  %v178 = vld [vmem:[%s162 + $0x3c] sm:$0xf]
  %v179 = vld [vmem:[%s162 + $0x40] sm:$0xf]
  %v180 = vld [vmem:[%s162 + $0x44] sm:$0xf]
  %v181 = vld [vmem:[%s162 + $0x48] sm:$0xf]
  %v182 = vld [vmem:[%s162 + $0x4c] sm:$0xf]
  %v183 = vld [vmem:[%s162 + $0x50] sm:$0xf]
  %v184 = vld [vmem:[%s162 + $0x54] sm:$0xf]
  %v185 = vld [vmem:[%s162 + $0x58] sm:$0xf]
  %v186 = vld [vmem:[%s162 + $0x5c] sm:$0xf]
  %v187 = vld [vmem:[%s162 + $0x60] sm:$0xf]
  %v213 = vunpack.c.l.b16 %v163
  %v214 = vunpack.c.l.b16 %v164
  %v215 = vunpack.c.l.b16 %v165
  %v216 = vunpack.c.l.b16 %v166
  %v217 = vunpack.c.l.b16 %v167
  %v218 = vunpack.c.l.b16 %v168
  %v219 = vunpack.c.l.b16 %v169
  %v220 = vunpack.c.l.b16 %v170
  %v221 = vunpack.c.l.b16 %v171
  %v222 = vunpack.c.l.b16 %v172
  %v223 = vunpack.c.l.b16 %v173
  %v224 = vunpack.c.l.b16 %v174
  %v225 = vunpack.c.l.b16 %v175
  %v226 = vunpack.c.l.b16 %v176
  %v227 = vunpack.c.l.b16 %v177
  %v228 = vunpack.c.l.b16 %v178
  %v229 = vunpack.c.l.b16 %v179
  %v230 = vunpack.c.l.b16 %v180
  %v231 = vunpack.c.l.b16 %v181
  %v232 = vunpack.c.l.b16 %v182
  %v233 = vunpack.c.l.b16 %v183
  %v234 = vunpack.c.l.b16 %v184
  %v235 = vunpack.c.l.b16 %v185
  %v236 = vunpack.c.l.b16 %v186
  %v237 = vunpack.c.l.b16 %v187
  %v238 = vpack.c.b16 %v214, %v213
  %v239 = vpack.c.b16 %v216, %v215
  %v240 = vpack.c.b16 %v218, %v217
  %v241 = vpack.c.b16 %v220, %v219
  %v242 = vpack.c.b16 %v222, %v221
  %v243 = vpack.c.b16 %v224, %v223
  %v244 = vpack.c.b16 %v226, %v225
  %v245 = vpack.c.b16 %v228, %v227
  %v246 = vpack.c.b16 %v230, %v229
  %v247 = vpack.c.b16 %v232, %v231
  %v248 = vpack.c.b16 %v234, %v233
  %v249 = vpack.c.b16 %v236, %v235
  %v250 = vpack.c.b16 %v237, %v237
  %v264 = vsel %vm130, %v250, 0
  %266 = vmatpush.bf16.msra.mxu0 %v245
  %267 = vmatpush.bf16.msra.mxu0 %v244
  %268 = vmatpush.bf16.msra.mxu0 %v243
  %269 = vmatpush.bf16.msra.mxu0 %v242
  %270 = vmatpush.bf16.msra.mxu0 %v241
  %271 = vmatpush.bf16.msra.mxu0 %v240
  %272 = vmatpush.bf16.msra.mxu0 %v239
  %273 = vmatpush.bf16.msra.mxu0 %v238
  %274 = vmatmul.bf16.gmra.mxu0 %v48
  %v275 = vpop.f32.mrf.mxu0
  %v276 = vadd.f32 0.0, %v275
  %v277 = vpop.f32.mrf.mxu0
  %v278 = vadd.f32 0.0, %v277
  %279 = vdwg.mxu0
  %280 = vmatpush.bf16.msra.mxu0 0
  %281 = vmatpush.bf16.msra.mxu0 0
  %282 = vmatpush.bf16.msra.mxu0 0
  %283 = vmatpush.bf16.msra.mxu0 %v264
  %284 = vmatpush.bf16.msra.mxu0 %v249
  %285 = vmatpush.bf16.msra.mxu0 %v248
  %286 = vmatpush.bf16.msra.mxu0 %v247
  %287 = vmatpush.bf16.msra.mxu0 %v246
  %288 = vmatmul.bf16.gmra.mxu0 %v128
  %v289 = vpop.f32.mrf.mxu0
  %v290 = vadd.f32 %v276, %v289
  %v291 = vpop.f32.mrf.mxu0
  %v292 = vadd.f32 %v278, %v291
  %293 = vdwg.mxu0
  %v294 = vmax.f32 %v158, %v290
  %v295 = vmax.f32 %v160, %v292
  %s296 = scalar_lea.vmem %s0, 200
  %v297 = vld [vmem:[%s296] sm:$0xf]
  %v298 = vld [vmem:[%s296 + $0x4] sm:$0xf]
  %v299 = vld [vmem:[%s296 + $0x8] sm:$0xf]
  %v300 = vld [vmem:[%s296 + $0xc] sm:$0xf]
  %v301 = vld [vmem:[%s296 + $0x10] sm:$0xf]
  %v302 = vld [vmem:[%s296 + $0x14] sm:$0xf]
  %v303 = vld [vmem:[%s296 + $0x18] sm:$0xf]
  %v304 = vld [vmem:[%s296 + $0x1c] sm:$0xf]
  %v305 = vld [vmem:[%s296 + $0x20] sm:$0xf]
  %v306 = vld [vmem:[%s296 + $0x24] sm:$0xf]
  %v307 = vld [vmem:[%s296 + $0x28] sm:$0xf]
  %v308 = vld [vmem:[%s296 + $0x2c] sm:$0xf]
  %v309 = vld [vmem:[%s296 + $0x30] sm:$0xf]
  %v310 = vld [vmem:[%s296 + $0x34] sm:$0xf]
  %v311 = vld [vmem:[%s296 + $0x38] sm:$0xf]
  %v312 = vld [vmem:[%s296 + $0x3c] sm:$0xf]
  %v313 = vld [vmem:[%s296 + $0x40] sm:$0xf]
  %v314 = vld [vmem:[%s296 + $0x44] sm:$0xf]
  %v315 = vld [vmem:[%s296 + $0x48] sm:$0xf]
  %v316 = vld [vmem:[%s296 + $0x4c] sm:$0xf]
  %v317 = vld [vmem:[%s296 + $0x50] sm:$0xf]
  %v318 = vld [vmem:[%s296 + $0x54] sm:$0xf]
  %v319 = vld [vmem:[%s296 + $0x58] sm:$0xf]
  %v320 = vld [vmem:[%s296 + $0x5c] sm:$0xf]
  %v321 = vld [vmem:[%s296 + $0x60] sm:$0xf]
  %v347 = vunpack.c.l.b16 %v297
  %v348 = vunpack.c.l.b16 %v298
  %v349 = vunpack.c.l.b16 %v299
  %v350 = vunpack.c.l.b16 %v300
  %v351 = vunpack.c.l.b16 %v301
  %v352 = vunpack.c.l.b16 %v302
  %v353 = vunpack.c.l.b16 %v303
  %v354 = vunpack.c.l.b16 %v304
  %v355 = vunpack.c.l.b16 %v305
  %v356 = vunpack.c.l.b16 %v306
  %v357 = vunpack.c.l.b16 %v307
  %v358 = vunpack.c.l.b16 %v308
  %v359 = vunpack.c.l.b16 %v309
  %v360 = vunpack.c.l.b16 %v310
  %v361 = vunpack.c.l.b16 %v311
  %v362 = vunpack.c.l.b16 %v312
  %v363 = vunpack.c.l.b16 %v313
  %v364 = vunpack.c.l.b16 %v314
  %v365 = vunpack.c.l.b16 %v315
  %v366 = vunpack.c.l.b16 %v316
  %v367 = vunpack.c.l.b16 %v317
  %v368 = vunpack.c.l.b16 %v318
  %v369 = vunpack.c.l.b16 %v319
  %v370 = vunpack.c.l.b16 %v320
  %v371 = vunpack.c.l.b16 %v321
  %v372 = vpack.c.b16 %v348, %v347
  %v373 = vpack.c.b16 %v350, %v349
  %v374 = vpack.c.b16 %v352, %v351
  %v375 = vpack.c.b16 %v354, %v353
  %v376 = vpack.c.b16 %v356, %v355
  %v377 = vpack.c.b16 %v358, %v357
  %v378 = vpack.c.b16 %v360, %v359
  %v379 = vpack.c.b16 %v362, %v361
  %v380 = vpack.c.b16 %v364, %v363
  %v381 = vpack.c.b16 %v366, %v365
  %v382 = vpack.c.b16 %v368, %v367
  %v383 = vpack.c.b16 %v370, %v369
  %v384 = vpack.c.b16 %v371, %v371
  %v398 = vsel %vm130, %v384, 0
  %400 = vmatpush.bf16.msra.mxu0 %v379
  %401 = vmatpush.bf16.msra.mxu0 %v378
  %402 = vmatpush.bf16.msra.mxu0 %v377
  %403 = vmatpush.bf16.msra.mxu0 %v376
  %404 = vmatpush.bf16.msra.mxu0 %v375
  %405 = vmatpush.bf16.msra.mxu0 %v374
  %406 = vmatpush.bf16.msra.mxu0 %v373
  %407 = vmatpush.bf16.msra.mxu0 %v372
  %408 = vmatmul.bf16.gmra.mxu0 %v48
  %v409 = vpop.f32.mrf.mxu0
  %v410 = vadd.f32 0.0, %v409
  %v411 = vpop.f32.mrf.mxu0
  %v412 = vadd.f32 0.0, %v411
  %413 = vdwg.mxu0
  %414 = vmatpush.bf16.msra.mxu0 0
  %415 = vmatpush.bf16.msra.mxu0 0
  %416 = vmatpush.bf16.msra.mxu0 0
  %417 = vmatpush.bf16.msra.mxu0 %v398
  %418 = vmatpush.bf16.msra.mxu0 %v383
  %419 = vmatpush.bf16.msra.mxu0 %v382
  %420 = vmatpush.bf16.msra.mxu0 %v381
  %421 = vmatpush.bf16.msra.mxu0 %v380
  %422 = vmatmul.bf16.gmra.mxu0 %v128
  %v423 = vpop.f32.mrf.mxu0
  %v424 = vadd.f32 %v410, %v423
  %v425 = vpop.f32.mrf.mxu0
  %v426 = vadd.f32 %v412, %v425
  %427 = vdwg.mxu0
  %v428 = vmax.f32 %v294, %v424
  %v429 = vmax.f32 %v295, %v426
  %s430 = scalar_lea.vmem %s0, 300
  %v431 = vld [vmem:[%s430] sm:$0xf]
  %v432 = vld [vmem:[%s430 + $0x4] sm:$0xf]
  %v433 = vld [vmem:[%s430 + $0x8] sm:$0xf]
  %v434 = vld [vmem:[%s430 + $0xc] sm:$0xf]
  %v435 = vld [vmem:[%s430 + $0x10] sm:$0xf]
  %v436 = vld [vmem:[%s430 + $0x14] sm:$0xf]
  %v437 = vld [vmem:[%s430 + $0x18] sm:$0xf]
  %v438 = vld [vmem:[%s430 + $0x1c] sm:$0xf]
  %v439 = vld [vmem:[%s430 + $0x20] sm:$0xf]
  %v440 = vld [vmem:[%s430 + $0x24] sm:$0xf]
  %v441 = vld [vmem:[%s430 + $0x28] sm:$0xf]
  %v442 = vld [vmem:[%s430 + $0x2c] sm:$0xf]
  %v443 = vld [vmem:[%s430 + $0x30] sm:$0xf]
  %v444 = vld [vmem:[%s430 + $0x34] sm:$0xf]
  %v445 = vld [vmem:[%s430 + $0x38] sm:$0xf]
  %v446 = vld [vmem:[%s430 + $0x3c] sm:$0xf]
  %v447 = vld [vmem:[%s430 + $0x40] sm:$0xf]
  %v448 = vld [vmem:[%s430 + $0x44] sm:$0xf]
  %v449 = vld [vmem:[%s430 + $0x48] sm:$0xf]
  %v450 = vld [vmem:[%s430 + $0x4c] sm:$0xf]
  %v451 = vld [vmem:[%s430 + $0x50] sm:$0xf]
  %v452 = vld [vmem:[%s430 + $0x54] sm:$0xf]
  %v453 = vld [vmem:[%s430 + $0x58] sm:$0xf]
  %v454 = vld [vmem:[%s430 + $0x5c] sm:$0xf]
  %v455 = vld [vmem:[%s430 + $0x60] sm:$0xf]
  %v481 = vunpack.c.l.b16 %v431
  %v482 = vunpack.c.l.b16 %v432
  %v483 = vunpack.c.l.b16 %v433
  %v484 = vunpack.c.l.b16 %v434
  %v485 = vunpack.c.l.b16 %v435
  %v486 = vunpack.c.l.b16 %v436
  %v487 = vunpack.c.l.b16 %v437
  %v488 = vunpack.c.l.b16 %v438
  %v489 = vunpack.c.l.b16 %v439
  %v490 = vunpack.c.l.b16 %v440
  %v491 = vunpack.c.l.b16 %v441
  %v492 = vunpack.c.l.b16 %v442
  %v493 = vunpack.c.l.b16 %v443
  %v494 = vunpack.c.l.b16 %v444
  %v495 = vunpack.c.l.b16 %v445
  %v496 = vunpack.c.l.b16 %v446
  %v497 = vunpack.c.l.b16 %v447
  %v498 = vunpack.c.l.b16 %v448
  %v499 = vunpack.c.l.b16 %v449
  %v500 = vunpack.c.l.b16 %v450
  %v501 = vunpack.c.l.b16 %v451
  %v502 = vunpack.c.l.b16 %v452
  %v503 = vunpack.c.l.b16 %v453
  %v504 = vunpack.c.l.b16 %v454
  %v505 = vunpack.c.l.b16 %v455
  %v506 = vpack.c.b16 %v482, %v481
  %v507 = vpack.c.b16 %v484, %v483
  %v508 = vpack.c.b16 %v486, %v485
  %v509 = vpack.c.b16 %v488, %v487
  %v510 = vpack.c.b16 %v490, %v489
  %v511 = vpack.c.b16 %v492, %v491
  %v512 = vpack.c.b16 %v494, %v493
  %v513 = vpack.c.b16 %v496, %v495
  %v514 = vpack.c.b16 %v498, %v497
  %v515 = vpack.c.b16 %v500, %v499
  %v516 = vpack.c.b16 %v502, %v501
  %v517 = vpack.c.b16 %v504, %v503
  %v518 = vpack.c.b16 %v505, %v505
  %v532 = vsel %vm130, %v518, 0
  %534 = vmatpush.bf16.msra.mxu0 %v513
  %535 = vmatpush.bf16.msra.mxu0 %v512
  %536 = vmatpush.bf16.msra.mxu0 %v511
  %537 = vmatpush.bf16.msra.mxu0 %v510
  %538 = vmatpush.bf16.msra.mxu0 %v509
  %539 = vmatpush.bf16.msra.mxu0 %v508
  %540 = vmatpush.bf16.msra.mxu0 %v507
  %541 = vmatpush.bf16.msra.mxu0 %v506
  %542 = vmatmul.bf16.gmra.mxu0 %v48
  %v543 = vpop.f32.mrf.mxu0
  %v544 = vadd.f32 0.0, %v543
  %v545 = vpop.f32.mrf.mxu0
  %v546 = vadd.f32 0.0, %v545
  %547 = vdwg.mxu0
  %548 = vmatpush.bf16.msra.mxu0 0
  %549 = vmatpush.bf16.msra.mxu0 0
  %550 = vmatpush.bf16.msra.mxu0 0
  %551 = vmatpush.bf16.msra.mxu0 %v532
  %552 = vmatpush.bf16.msra.mxu0 %v517
  %553 = vmatpush.bf16.msra.mxu0 %v516
  %554 = vmatpush.bf16.msra.mxu0 %v515
  %555 = vmatpush.bf16.msra.mxu0 %v514
  %556 = vmatmul.bf16.gmra.mxu0 %v128
  %v557 = vpop.f32.mrf.mxu0
  %v558 = vadd.f32 %v544, %v557
  %v559 = vpop.f32.mrf.mxu0
  %v560 = vadd.f32 %v546, %v559
  %561 = vdwg.mxu0
  %v562 = vmax.f32 %v428, %v558
  %v563 = vmax.f32 %v429, %v560
  %v564 = vld [vmem:[%s2] sm:$0xff]
  %v565 = vld [vmem:[%s2 + $0x8] sm:$0xff]
  %567 = vset.pattern.permute.xlu0 0
  %568 = vperm.xlu0 %567, %v564
  %v569 = vpop.permute.xlu0 %568
  %572 = vset.pattern.permute.xlu0 0
  %573 = vperm.xlu0 %572, %v565
  %v574 = vpop.permute.xlu0 %573
  %v576 = vadd.f32 %v562, %v569
  %v577 = vadd.f32 %v563, %v574
  %v578 = vmax.f32 %v576, 0.0
  %v579 = vmax.f32 %v577, 0.0
  %v580 = vpack.c.bf16 %v578, %v578
  %v581 = vpack.c.bf16 %v579, %v579
  %vm582 = vcmask 404480
  %583 = vst.msk [vmem:[%s3] sm:$0xf] %vm582, %v580
  %584 = vst.msk [vmem:[%s3 + $0x4] sm:$0xf] %vm582, %v581
  // Predicated region
  $region14: #{net_forward.4} parent=0 // pred_check
    _
  $region15: #{net_forward.4} parent=0 // pred_check_branch
    %586 = sbr.rel (0) target = $region17
  $region16: #{net_forward.4} parent=0 // pred_region
    _
  $region17: #{net_forward.4} parent=0 // pred_fallthru
    _
  // Predicated region
  $region18: #{net_forward.4} parent=0 // pred_check
    _
  $region19: #{net_forward.4} parent=0 // pred_check_branch
    %588 = sbr.rel (0) target = $region21
  $region20: #{net_forward.4} parent=0 // pred_region
    _
  $region21: #{net_forward.4} parent=0 // pred_fallthru
    _

// kernel: net_forward.5
$region0: #{net_forward.5}
  #allocation0 [shape = 'u32[]', space=smem, size = 0x4, offset = 0x4, fixed_abs, tag = 'smem constant byte address 0x4 - core index']
  #allocation1 [shape = 'u32[72,128]{1,0:T(1,128)}', space=vmem, size = 0x9000, scoped, tag = 'internal scratch']
  %s0 = inlined_call_operand.vmem [shape: bf16[2,400], index: 0, kind: input, shape index: {}]
  %s1 = inlined_call_operand.vmem [shape: bf16[400,120], index: 1, kind: input, shape index: {}]
  %s2 = inlined_call_operand.vmem [shape: f32[1,120], index: 2, kind: input, shape index: {}]
  %s3 = inlined_call_operand.vmem [shape: bf16[120,84], index: 3, kind: input, shape index: {}]
  %s4 = inlined_call_operand.vmem [shape: f32[1,84], index: 4, kind: input, shape index: {}]
  %s5 = inlined_call_operand.vmem [shape: bf16[84,10], index: 5, kind: input, shape index: {}]
  %s6 = inlined_call_operand.vmem [shape: f32[1,10], index: 6, kind: input, shape index: {}]
  %s7 = inlined_call_operand.hbm [shape: f32[2,10], index: 7, kind: output, shape index: {}]
  %s8 = sld [smem:[#allocation0]]
  $region38: #{net_forward.5} parent=0
    _
  %s10 = ssub.s32 1, %s8
  %s11 = scalar_select 0, %s10, %s8
  $region1: #{net_forward.5} parent=0
    #allocation2 [shape = 'u8[1024]{0}', space=vmem, size = 0x400, scoped, tag = 'output window, operand 0, single buffered']
    #allocation3 [shape = 's32[1]{0}', space=sflag, size = 0x4, scoped, tag = 'scoped memory for net_forward.5']
    %12 = vsyncpa [#allocation3], 0
    // Predicated region
    $region2: #{net_forward.5} parent=1 // pred_check
      _
    $region3: #{net_forward.5} parent=1 // pred_check_branch
      %14 = sbr.rel (0) target = $region5
    $region4: #{net_forward.5} parent=1 // pred_region
      _
    $region5: #{net_forward.5} parent=1 // pred_fallthru
      _
    // Predicated region
    $region6: #{net_forward.5} parent=1 // pred_check
      _
    $region7: #{net_forward.5} parent=1 // pred_check_branch
      %16 = sbr.rel (0) target = $region9
    $region8: #{net_forward.5} parent=1 // pred_region
      _
    $region9: #{net_forward.5} parent=1 // pred_fallthru
      _
    // Predicated region
    $region10: #{net_forward.5} parent=1 // pred_check
      _
    $region11: #{net_forward.5} parent=1 // pred_check_branch
      %18 = sbr.rel (0) target = $region13
    $region12: #{net_forward.5} parent=1 // pred_region
      _
    $region13: #{net_forward.5} parent=1 // pred_fallthru
      _
    // Predicated region
    $region14: #{net_forward.5} parent=1 // pred_check
      _
    $region15: #{net_forward.5} parent=1 // pred_check_branch
      %20 = sbr.rel (0) target = $region17
    $region16: #{net_forward.5} parent=1 // pred_region
      _
    $region17: #{net_forward.5} parent=1 // pred_fallthru
      _
    // Predicated region
    $region18: #{net_forward.5} parent=1 // pred_check
      _
    $region19: #{net_forward.5} parent=1 // pred_check_branch
      %22 = sbr.rel (0) target = $region21
    $region20: #{net_forward.5} parent=1 // pred_region
      _
    $region21: #{net_forward.5} parent=1 // pred_fallthru
      _
    // Predicated region
    $region22: #{net_forward.5} parent=1 // pred_check
      _
    $region23: #{net_forward.5} parent=1 // pred_check_branch
      %24 = sbr.rel (0) target = $region25
    $region24: #{net_forward.5} parent=1 // pred_region
      _
    $region25: #{net_forward.5} parent=1 // pred_fallthru
      _
    // Predicated region
    $region26: #{net_forward.5} parent=1 // pred_check
      _
    $region27: #{net_forward.5} parent=1 // pred_check_branch
      %26 = sbr.rel (0) target = $region29
    $region28: #{net_forward.5} parent=1 // pred_region
      _
    $region29: #{net_forward.5} parent=1 // pred_fallthru
      _
    %v28 = vld [vmem:[%s0] sm:$0xf]
    %v29 = vld [vmem:[%s1] sm:$0xf]
    %v30 = vld [vmem:[%s1 + $0x4] sm:$0xf]
    %v31 = vld [vmem:[%s1 + $0x8] sm:$0xf]
    %v32 = vld [vmem:[%s1 + $0xc] sm:$0xf]
    %v33 = vld [vmem:[%s1 + $0x10] sm:$0xf]
    %v34 = vld [vmem:[%s1 + $0x14] sm:$0xf]
    %v35 = vld [vmem:[%s1 + $0x18] sm:$0xf]
    %v36 = vld [vmem:[%s1 + $0x1c] sm:$0xf]
    %v37 = vld [vmem:[%s1 + $0x20] sm:$0xf]
    %v38 = vld [vmem:[%s1 + $0x24] sm:$0xf]
    %v39 = vld [vmem:[%s1 + $0x28] sm:$0xf]
    %v40 = vld [vmem:[%s1 + $0x2c] sm:$0xf]
    %v41 = vld [vmem:[%s1 + $0x30] sm:$0xf]
    %v42 = vld [vmem:[%s1 + $0x34] sm:$0xf]
    %v43 = vld [vmem:[%s1 + $0x38] sm:$0xf]
    %v44 = vld [vmem:[%s1 + $0x3c] sm:$0xf]
    %v45 = vld [vmem:[%s1 + $0x40] sm:$0xf]
    %v46 = vld [vmem:[%s1 + $0x44] sm:$0xf]
    %v47 = vld [vmem:[%s1 + $0x48] sm:$0xf]
    %v48 = vld [vmem:[%s1 + $0x4c] sm:$0xf]
    %v49 = vld [vmem:[%s1 + $0x50] sm:$0xf]
    %v50 = vld [vmem:[%s1 + $0x54] sm:$0xf]
    %v51 = vld [vmem:[%s1 + $0x58] sm:$0xf]
    %v52 = vld [vmem:[%s1 + $0x5c] sm:$0xf]
    %v53 = vld [vmem:[%s1 + $0x60] sm:$0xf]
    %v54 = vld [vmem:[%s1 + $0x64] sm:$0xf]
    %v55 = vld [vmem:[%s1 + $0x68] sm:$0xf]
    %v56 = vld [vmem:[%s1 + $0x6c] sm:$0xf]
    %v57 = vld [vmem:[%s1 + $0x70] sm:$0xf]
    %v58 = vld [vmem:[%s1 + $0x74] sm:$0xf]
    %v59 = vld [vmem:[%s1 + $0x78] sm:$0xf]
    %v60 = vld [vmem:[%s1 + $0x7c] sm:$0xf]
    %v61 = vld [vmem:[%s1 + $0x80] sm:$0xf]
    %v62 = vld [vmem:[%s1 + $0x84] sm:$0xf]
    %v63 = vld [vmem:[%s1 + $0x88] sm:$0xf]
    %v64 = vld [vmem:[%s1 + $0x8c] sm:$0xf]
    %v65 = vld [vmem:[%s1 + $0x90] sm:$0xf]
    %v66 = vld [vmem:[%s1 + $0x94] sm:$0xf]
    %v67 = vld [vmem:[%s1 + $0x98] sm:$0xf]
    %v68 = vld [vmem:[%s1 + $0x9c] sm:$0xf]
    %v69 = vld [vmem:[%s1 + $0xa0] sm:$0xf]
    %v70 = vld [vmem:[%s1 + $0xa4] sm:$0xf]
    %v71 = vld [vmem:[%s1 + $0xa8] sm:$0xf]
    %v72 = vld [vmem:[%s1 + $0xac] sm:$0xf]
    %v73 = vld [vmem:[%s1 + $0xb0] sm:$0xf]
    %v74 = vld [vmem:[%s1 + $0xb4] sm:$0xf]
    %v75 = vld [vmem:[%s1 + $0xb8] sm:$0xf]
    %v76 = vld [vmem:[%s1 + $0xbc] sm:$0xf]
    %v77 = vld [vmem:[%s1 + $0xc0] sm:$0xf]
    %v78 = vld [vmem:[%s1 + $0xc4] sm:$0xf]
    %v79 = vld [vmem:[%s2] sm:$0x1]
    %v81 = vperm.slane %v79, 0
    %84 = vst [vmem:[#allocation1] ss:$9 sm:$0xff] %v28
    %v85 = vld [vmem:[#allocation1] sm:$0xff]
    %v86 = vld [vmem:[#allocation1 + $0x9] sm:$0xff]
    %v87 = vld [vmem:[#allocation1 + $0x12] sm:$0xff]
    %v88 = vld [vmem:[#allocation1 + $0x1b] sm:$0xff]
    %v142 = vunpack.c.l.b16 %v29
    %v143 = vunpack.c.l.b16 %v30
    %v144 = vunpack.c.l.b16 %v31
    %v145 = vunpack.c.l.b16 %v32
    %v146 = vunpack.c.l.b16 %v33
    %v147 = vunpack.c.l.b16 %v34
    %v148 = vunpack.c.l.b16 %v35
    %v149 = vunpack.c.l.b16 %v36
    %v150 = vunpack.c.l.b16 %v37
    %v151 = vunpack.c.l.b16 %v38
    %v152 = vunpack.c.l.b16 %v39
    %v153 = vunpack.c.l.b16 %v40
    %v154 = vunpack.c.l.b16 %v41
    %v155 = vunpack.c.l.b16 %v42
    %v156 = vunpack.c.l.b16 %v43
    %v157 = vunpack.c.l.b16 %v44
    %v158 = vunpack.c.l.b16 %v45
    %v159 = vunpack.c.l.b16 %v46
    %v160 = vunpack.c.l.b16 %v47
    %v161 = vunpack.c.l.b16 %v48
    %v162 = vunpack.c.l.b16 %v49
    %v163 = vunpack.c.l.b16 %v50
    %v164 = vunpack.c.l.b16 %v51
    %v165 = vunpack.c.l.b16 %v52
    %v166 = vunpack.c.l.b16 %v53
    %v167 = vunpack.c.l.b16 %v54
    %v168 = vunpack.c.l.b16 %v55
    %v169 = vunpack.c.l.b16 %v56
    %v170 = vunpack.c.l.b16 %v57
    %v171 = vunpack.c.l.b16 %v58
    %v172 = vunpack.c.l.b16 %v59
    %v173 = vunpack.c.l.b16 %v60
    %v174 = vunpack.c.l.b16 %v61
    %v175 = vunpack.c.l.b16 %v62
    %v176 = vunpack.c.l.b16 %v63
    %v177 = vunpack.c.l.b16 %v64
    %v178 = vunpack.c.l.b16 %v65
    %v179 = vunpack.c.l.b16 %v66
    %v180 = vunpack.c.l.b16 %v67
    %v181 = vunpack.c.l.b16 %v68
    %v182 = vunpack.c.l.b16 %v69
    %v183 = vunpack.c.l.b16 %v70
    %v184 = vunpack.c.l.b16 %v71
    %v185 = vunpack.c.l.b16 %v72
    %v186 = vunpack.c.l.b16 %v73
    %v187 = vunpack.c.l.b16 %v74
    %v188 = vunpack.c.l.b16 %v75
    %v189 = vunpack.c.l.b16 %v76
    %v190 = vunpack.c.l.b16 %v77
    %v191 = vunpack.c.l.b16 %v78
    %v192 = vpack.c.b16 %v143, %v142
    %v193 = vpack.c.b16 %v145, %v144
    %v194 = vpack.c.b16 %v147, %v146
    %v195 = vpack.c.b16 %v149, %v148
    %v196 = vpack.c.b16 %v151, %v150
    %v197 = vpack.c.b16 %v153, %v152
    %v198 = vpack.c.b16 %v155, %v154
    %v199 = vpack.c.b16 %v157, %v156
    %v200 = vpack.c.b16 %v159, %v158
    %v201 = vpack.c.b16 %v161, %v160
    %v202 = vpack.c.b16 %v163, %v162
    %v203 = vpack.c.b16 %v165, %v164
    %v204 = vpack.c.b16 %v167, %v166
    %v205 = vpack.c.b16 %v169, %v168
    %v206 = vpack.c.b16 %v171, %v170
    %v207 = vpack.c.b16 %v173, %v172
    %v208 = vpack.c.b16 %v175, %v174
    %v209 = vpack.c.b16 %v177, %v176
    %v210 = vpack.c.b16 %v179, %v178
    %v211 = vpack.c.b16 %v181, %v180
    %v212 = vpack.c.b16 %v183, %v182
    %v213 = vpack.c.b16 %v185, %v184
    %v214 = vpack.c.b16 %v187, %v186
    %v215 = vpack.c.b16 %v189, %v188
    %v216 = vpack.c.b16 %v191, %v190
    %vm242 = vcmask 130048
    %v243 = vsel %vm242, %v88, 0
    %245 = vmatpush.bf16.msra.mxu0 %v199
    %246 = vmatpush.bf16.msra.mxu0 %v198
    %247 = vmatpush.bf16.msra.mxu0 %v197
    %248 = vmatpush.bf16.msra.mxu0 %v196
    %249 = vmatpush.bf16.msra.mxu0 %v195
    %250 = vmatpush.bf16.msra.mxu0 %v194
    %251 = vmatpush.bf16.msra.mxu0 %v193
    %252 = vmatpush.bf16.msra.mxu0 %v192
    %253 = vmatmul.bf16.gmra.mxu0 %v85
    %v254 = vpop.f32.mrf.mxu0
    %v255 = vadd.f32 %v81, %v254
    %v256 = vpop.f32.mrf.mxu0
    %257 = vdwg.mxu0
    %258 = vmatpush.bf16.msra.mxu0 %v207
    %259 = vmatpush.bf16.msra.mxu0 %v206
    %260 = vmatpush.bf16.msra.mxu0 %v205
    %261 = vmatpush.bf16.msra.mxu0 %v204
    %262 = vmatpush.bf16.msra.mxu0 %v203
    %263 = vmatpush.bf16.msra.mxu0 %v202
    %264 = vmatpush.bf16.msra.mxu0 %v201
    %265 = vmatpush.bf16.msra.mxu0 %v200
    %266 = vmatmul.bf16.gmra.mxu0 %v86
    %v267 = vpop.f32.mrf.mxu0
    %v268 = vadd.f32 %v255, %v267
    %v269 = vpop.f32.mrf.mxu0
    %270 = vdwg.mxu0
    %271 = vmatpush.bf16.msra.mxu0 %v215
    %272 = vmatpush.bf16.msra.mxu0 %v214
    %273 = vmatpush.bf16.msra.mxu0 %v213
    %274 = vmatpush.bf16.msra.mxu0 %v212
    %275 = vmatpush.bf16.msra.mxu0 %v211
    %276 = vmatpush.bf16.msra.mxu0 %v210
    %277 = vmatpush.bf16.msra.mxu0 %v209
    %278 = vmatpush.bf16.msra.mxu0 %v208
    %279 = vmatmul.bf16.gmra.mxu0 %v87
    %v280 = vpop.f32.mrf.mxu0
    %v281 = vadd.f32 %v268, %v280
    %v282 = vpop.f32.mrf.mxu0
    %283 = vdwg.mxu0
    %284 = vmatpush.bf16.msra.mxu0 0
    %285 = vmatpush.bf16.msra.mxu0 0
    %286 = vmatpush.bf16.msra.mxu0 0
    %287 = vmatpush.bf16.msra.mxu0 0
    %288 = vmatpush.bf16.msra.mxu0 0
    %289 = vmatpush.bf16.msra.mxu0 0
    %290 = vmatpush.bf16.msra.mxu0 0
    %291 = vmatpush.bf16.msra.mxu0 %v216
    %292 = vmatmul.bf16.gmra.mxu0 %v243
    %v293 = vpop.f32.mrf.mxu0
    %v294 = vadd.f32 %v281, %v293
    %v295 = vpop.f32.mrf.mxu0
    %296 = vdwg.mxu0
    %v297 = vmax.f32 %v294, 0.0
    %v298 = vpack.c.bf16 %v297, %v297
    %v299 = vld [vmem:[%s3] sm:$0xf]
    %v300 = vld [vmem:[%s3 + $0x4] sm:$0xf]
    %v301 = vld [vmem:[%s3 + $0x8] sm:$0xf]
    %v302 = vld [vmem:[%s3 + $0xc] sm:$0xf]
    %v303 = vld [vmem:[%s3 + $0x10] sm:$0xf]
    %v304 = vld [vmem:[%s3 + $0x14] sm:$0xf]
    %v305 = vld [vmem:[%s3 + $0x18] sm:$0xf]
    %v306 = vld [vmem:[%s3 + $0x1c] sm:$0xf]
    %v307 = vld [vmem:[%s3 + $0x20] sm:$0xf]
    %v308 = vld [vmem:[%s3 + $0x24] sm:$0xf]
    %v309 = vld [vmem:[%s3 + $0x28] sm:$0xf]
    %v310 = vld [vmem:[%s3 + $0x2c] sm:$0xf]
    %v311 = vld [vmem:[%s3 + $0x30] sm:$0xf]
    %v312 = vld [vmem:[%s3 + $0x34] sm:$0xf]
    %v313 = vld [vmem:[%s3 + $0x38] sm:$0xf]
    %v314 = vld [vmem:[%s4] sm:$0x1]
    %v316 = vperm.slane %v314, 0
    %v333 = vunpack.c.l.b16 %v299
    %v334 = vunpack.c.l.b16 %v300
    %v335 = vunpack.c.l.b16 %v301
    %v336 = vunpack.c.l.b16 %v302
    %v337 = vunpack.c.l.b16 %v303
    %v338 = vunpack.c.l.b16 %v304
    %v339 = vunpack.c.l.b16 %v305
    %v340 = vunpack.c.l.b16 %v306
    %v341 = vunpack.c.l.b16 %v307
    %v342 = vunpack.c.l.b16 %v308
    %v343 = vunpack.c.l.b16 %v309
    %v344 = vunpack.c.l.b16 %v310
    %v345 = vunpack.c.l.b16 %v311
    %v346 = vunpack.c.l.b16 %v312
    %v347 = vunpack.c.l.b16 %v313
    %v348 = vpack.c.b16 %v334, %v333
    %v349 = vpack.c.b16 %v336, %v335
    %v350 = vpack.c.b16 %v338, %v337
    %v351 = vpack.c.b16 %v340, %v339
    %v352 = vpack.c.b16 %v342, %v341
    %v353 = vpack.c.b16 %v344, %v343
    %v354 = vpack.c.b16 %v346, %v345
    %v355 = vpack.c.b16 %v347, %v347
    %vm363 = vcmask 982016
    %v365 = vsel %vm363, %v298, 0
    %vm367 = vcmask 1043456
    %v369 = vsel %vm367, %v355, 0
    %371 = vmatpush.bf16.msra.mxu0 %v369
    %372 = vmatpush.bf16.msra.mxu0 %v354
    %373 = vmatpush.bf16.msra.mxu0 %v353
    %374 = vmatpush.bf16.msra.mxu0 %v352
    %375 = vmatpush.bf16.msra.mxu0 %v351
    %376 = vmatpush.bf16.msra.mxu0 %v350
    %377 = vmatpush.bf16.msra.mxu0 %v349
    %378 = vmatpush.bf16.msra.mxu0 %v348
    %379 = vmatmul.bf16.gmra.mxu0 %v365
    %v380 = vpop.f32.mrf.mxu0
    %v381 = vadd.f32 %v316, %v380
    %v382 = vpop.f32.mrf.mxu0
    %383 = vdwg.mxu0
    %v384 = vmax.f32 %v381, 0.0
    %v385 = vpack.c.bf16 %v384, %v384
    %v386 = vld [vmem:[%s5] sm:$0xf]
    %v387 = vld [vmem:[%s5 + $0x4] sm:$0xf]
    %v388 = vld [vmem:[%s5 + $0x8] sm:$0xf]
    %v389 = vld [vmem:[%s5 + $0xc] sm:$0xf]
    %v390 = vld [vmem:[%s5 + $0x10] sm:$0xf]
    %v391 = vld [vmem:[%s5 + $0x14] sm:$0xf]
    %v392 = vld [vmem:[%s5 + $0x18] sm:$0xf]
    %v393 = vld [vmem:[%s5 + $0x1c] sm:$0xf]
    %v394 = vld [vmem:[%s5 + $0x20] sm:$0xf]
    %v395 = vld [vmem:[%s5 + $0x24] sm:$0xf]
    %v396 = vld [vmem:[%s5 + $0x28] sm:$0x3]
    %v397 = vld [vmem:[%s6] sm:$0x1]
    %v399 = vperm.slane %v397, 0
    %v412 = vunpack.c.l.b16 %v386
    %v413 = vunpack.c.l.b16 %v387
    %v414 = vunpack.c.l.b16 %v388
    %v415 = vunpack.c.l.b16 %v389
    %v416 = vunpack.c.l.b16 %v390
    %v417 = vunpack.c.l.b16 %v391
    %v418 = vunpack.c.l.b16 %v392
    %v419 = vunpack.c.l.b16 %v393
    %v420 = vunpack.c.l.b16 %v394
    %v421 = vunpack.c.l.b16 %v395
    %v422 = vunpack.c.l.b16 %v396
    %v423 = vpack.c.b16 %v413, %v412
    %v424 = vpack.c.b16 %v415, %v414
    %v425 = vpack.c.b16 %v417, %v416
    %v426 = vpack.c.b16 %v419, %v418
    %v427 = vpack.c.b16 %v421, %v420
    %v428 = vpack.c.b16 %v422, %v422
    %vm434 = vcmask 687104
    %v436 = vsel %vm434, %v385, 0
    %vm438 = vcmask 1041408
    %v440 = vsel %vm438, %v428, 0
    %442 = vmatpush.bf16.msra.mxu0 0
    %443 = vmatpush.bf16.msra.mxu0 0
    %444 = vmatpush.bf16.msra.mxu0 %v440
    %445 = vmatpush.bf16.msra.mxu0 %v427
    %446 = vmatpush.bf16.msra.mxu0 %v426
    %447 = vmatpush.bf16.msra.mxu0 %v425
    %448 = vmatpush.bf16.msra.mxu0 %v424
    %449 = vmatpush.bf16.msra.mxu0 %v423
    %450 = vmatmul.bf16.gmra.mxu0 %v436
    %v451 = vpop.f32.mrf.mxu0
    %v452 = vadd.f32 %v399, %v451
    %v453 = vpop.f32.mrf.mxu0
    %454 = vdwg.mxu0
    %vm455 = vcmask 74752
    %456 = vst.msk [vmem:[#allocation2] sm:$0x3] %vm455, %v452
    // Predicated region
    $region30: #{net_forward.5} parent=1 // pred_check
      _
    $region31: #{net_forward.5} parent=1 // pred_check_branch
      %458 = sbr.rel (0) target = $region33
    $region32: #{net_forward.5} parent=1 // pred_region
      %460 = vsyncadd [#allocation3], 0
      %s462 = sshll.u32 [#allocation2], 4
      %s463 = int_to_ptr.vmem [resolvable:$true] %s462
      %s464 = sshll.u32 %s7, 4
      %s465 = int_to_ptr.hbm [resolvable:$true] %s464
      %467 = dma.vmem_to_hbm [thread:$0]  %s463, 32, %s465, [#allocation3]
    $region33: #{net_forward.5} parent=1 // pred_fallthru
      _
    // Predicated region
    $region34: #{net_forward.5} parent=1 // pred_check
      _
    $region35: #{net_forward.5} parent=1 // pred_check_branch
      %469 = sbr.rel (0) target = $region37
    $region36: #{net_forward.5} parent=1 // pred_region
      %471 = dma.done [#allocation3], 32
    $region37: #{net_forward.5} parent=1 // pred_fallthru
      _
    %472 = vsyncpa [#allocation3], 1

</llo_original>
